<compile_context>
chip_gen: v5e
topology: v5e:2x2
jax: 0.10.0
libtpu: 0.0.40
codegen_flags: <defaults>
</compile_context>

<pallas_src>
import jax
import jax.numpy as jnp
from jax import lax
from jax.experimental import pallas as pl
from jax.experimental.pallas import tpu as pltpu

C1 = 0.01 ** 2
C2 = 0.03 ** 2


def _ssim_kernel(x_ref, y_ref, o_ref, xpad_ref, ypad_ref):
    # x_ref / y_ref: (B, H, W) unpadded planes
    # o_ref:         (B, H, W) SSIM loss map
    # xpad_ref/ypad_ref: (B, H+2, W+2) f32 VMEM scratch for the reflection pad
    B, H, W = o_ref.shape

    # --- ReflectionPad2d(1) built in VMEM (no padded HBM copies). ---
    x = x_ref[...].astype(jnp.float32)
    y = y_ref[...].astype(jnp.float32)
    for src, pad in ((x, xpad_ref), (y, ypad_ref)):
        pad[:, 1:H + 1, 1:W + 1] = src
        # reflect rows: padded row 0 <- x row 1, padded row H+1 <- x row H-2
        pad[:, 0:1, 1:W + 1] = src[:, 1:2, :]
        pad[:, H + 1:H + 2, 1:W + 1] = src[:, H - 2:H - 1, :]
        # reflect columns (rows already filled, so corners come along for free)
        pad[:, :, 0:1] = pad[:, :, 2:3]
        pad[:, :, W + 1:W + 2] = pad[:, :, W - 1:W]

    xp = xpad_ref[...]
    yp = ypad_ref[...]

    # --- Products hoisted out of the pooling taps (computed once per plane).
    planes = (xp, yp, xp * xp, yp * yp, xp * yp)

    # --- Separable 3x3 box sum: 3-tap column sum then 3-tap row sum. ---
    # TODO(synk): for lane-aligned widths (W % 128 == 0) the row taps could use
    # pltpu.roll (XLU) instead of lane-offset slices; slices are kept because
    # rotate lowering of narrow (<128) lane dims is not guaranteed.
    def box3(p):
        c = p[:, 0:H, :] + p[:, 1:H + 1, :] + p[:, 2:H + 2, :]      # (B, H, W+2)
        return c[:, :, 0:W] + c[:, :, 1:W + 1] + c[:, :, 2:W + 2]   # (B, H, W)

    inv9 = jnp.float32(1.0 / 9.0)
    mu_x, mu_y, m_xx, m_yy, m_xy = [box3(p) * inv9 for p in planes]

    sigma_x = m_xx - mu_x * mu_x
    sigma_y = m_yy - mu_y * mu_y
    sigma_xy = m_xy - mu_x * mu_y

    ssim_n = (2.0 * mu_x * mu_y + C1) * (2.0 * sigma_xy + C2)
    ssim_d = (mu_x * mu_x + mu_y * mu_y + C1) * (sigma_x + sigma_y + C2)
    # ssim_d > 0 always (C1, C2 > 0); route the divide to the EUP.
    res = jnp.clip((1.0 - ssim_n * pl.reciprocal(ssim_d, approx=True)) * 0.5,
                   0.0, 1.0)
    o_ref[...] = res.astype(o_ref.dtype)


def _planes_per_block(n_planes, H, W, budget_bytes=24 << 20):
    """How many (H, W) planes per grid step: as many as the VMEM budget allows,
    while keeping >= 2 grid steps so both v7x TensorCores get work (a no-op on
    single-core v5e/v6e)."""
    per_plane = 24 * H * W * 4  # rough: double-buffered I/O + pad scratch + temps
    cap = max(1, budget_bytes // per_plane)
    if n_planes >= 2:
        cap = min(cap, max(1, n_planes // 2))
    best = 1
    for d in range(1, n_planes + 1):
        if n_planes % d == 0 and d <= cap:
            best = d
    return best


def ssim_pallas(x, y):
    """x, y: (N, C, H, W) -> SSIM loss map (N, C, H, W); same semantics as the
    PyTorch SSIM module (ReflectionPad2d(1) + AvgPool2d(3, 1))."""
    N, C, H, W = x.shape
    assert H >= 3 and W >= 3, "SSIM 3x3 window needs H, W >= 3"
    P = N * C
    xs = x.reshape(P, H, W)
    ys = y.reshape(P, H, W)

    B = _planes_per_block(P, H, W)
    # TODO(synk): very large planes (e.g. 1080p on v7x's 64 MiB VMEM) need an
    # extra row-tile grid axis with a 2-row halo; whole planes are used here.

    out = pl.pallas_call(
        _ssim_kernel,
        out_shape=jax.ShapeDtypeStruct((P, H, W), x.dtype),
        grid=(P // B,),
        in_specs=[
            pl.BlockSpec((B, H, W), lambda i: (i, 0, 0)),
            pl.BlockSpec((B, H, W), lambda i: (i, 0, 0)),
        ],
        out_specs=pl.BlockSpec((B, H, W), lambda i: (i, 0, 0)),
        scratch_shapes=[
            pltpu.VMEM((B, H + 2, W + 2), jnp.float32),
            pltpu.VMEM((B, H + 2, W + 2), jnp.float32),
        ],
        compiler_params=pltpu.CompilerParams(
            dimension_semantics=("parallel",),
            vmem_limit_bytes=64 * 1024 * 1024,
        ),
    )(xs, ys)
    return out.reshape(N, C, H, W)


def _ssim_reference(x, y):
    """Pure-JAX reference (reduce_window mean pooling) for sanity checking."""
    pad = ((0, 0), (0, 0), (1, 1), (1, 1))
    xp = jnp.pad(x, pad, mode="reflect")
    yp = jnp.pad(y, pad, mode="reflect")

    def avg3(z):
        s = lax.reduce_window(z, 0.0, lax.add, (1, 1, 3, 3), (1, 1, 1, 1), "VALID")
        return s / 9.0

    mu_x = avg3(xp)
    mu_y = avg3(yp)
    sigma_x = avg3(xp * xp) - mu_x ** 2
    sigma_y = avg3(yp * yp) - mu_y ** 2
    sigma_xy = avg3(xp * yp) - mu_x * mu_y
    n = (2 * mu_x * mu_y + C1) * (2 * sigma_xy + C2)
    d = (mu_x ** 2 + mu_y ** 2 + C1) * (sigma_x + sigma_y + C2)
    return jnp.clip((1 - n / d) / 2, 0.0, 1.0)


if __name__ == "__main__":
    key = jax.random.PRNGKey(0)
    kx, ky = jax.random.split(key)
    N, C, H, W = 2, 4, 16, 16
    x = jax.random.uniform(kx, (N, C, H, W), dtype=jnp.float32)
    y = jax.random.uniform(ky, (N, C, H, W), dtype=jnp.float32)

    out = ssim_pallas(x, y)
    jax.block_until_ready(out)

    ref = _ssim_reference(x, y)
    assert out.shape == (N, C, H, W)
    # Tolerance loosened vs. exact-divide version because of the EUP
    # approximate reciprocal (per the perf review); padding/pooling errors
    # would be orders of magnitude larger than this.
    err = float(jnp.max(jnp.abs(out - ref)))
    assert err < 5e-3, err
    print("KERNEL_OK")
</pallas_src>

<mosaic_0001>
module attributes {stable_mosaic.version = 11 : i64} {
  func.func @_ssim_kernel(%arg0: i32, %arg1: memref<4x16x16xf32, #tpu.memory_space<vmem>>, %arg2: memref<4x16x16xf32, #tpu.memory_space<vmem>>, %arg3: memref<4x16x16xf32, #tpu.memory_space<vmem>>, %arg4: memref<4x18x18xf32, #tpu.memory_space<vmem>>, %arg5: memref<4x18x18xf32, #tpu.memory_space<vmem>>) attributes {dimension_semantics = [#tpu.dimension_semantics<parallel>], iteration_bounds = array<i64: 2>, scalar_prefetch = 0 : i64, scratch_operands = 2 : i64, tpu.core_type = #tpu.core_type<tc>, window_params = [{transform_indices = @transform_0, window_bounds = array<i64: 4, 16, 16>}, {transform_indices = @transform_1, window_bounds = array<i64: 4, 16, 16>}, {transform_indices = @transform_2, window_bounds = array<i64: 4, 16, 16>}]} {
    %c0 = arith.constant 0 : index
    %c0_0 = arith.constant 0 : index
    %c0_1 = arith.constant 0 : index
    %0 = vector.load %arg1[%c0, %c0_0, %c0_1] : memref<4x16x16xf32, #tpu.memory_space<vmem>>, vector<4x16x16xf32>
    %c0_2 = arith.constant 0 : index
    %c0_3 = arith.constant 0 : index
    %c0_4 = arith.constant 0 : index
    %1 = vector.load %arg2[%c0_2, %c0_3, %c0_4] : memref<4x16x16xf32, #tpu.memory_space<vmem>>, vector<4x16x16xf32>
    %c0_5 = arith.constant 0 : index
    %c1 = arith.constant 1 : index
    %c1_6 = arith.constant 1 : index
    %2 = vector.load %arg4[%c0_5, %c1, %c1_6] : memref<4x18x18xf32, #tpu.memory_space<vmem>>, vector<4x16x16xf32>
    tpu.vector_store %arg4[%c0_5, %c1, %c1_6], %0 {strides = array<i32>} : memref<4x18x18xf32, #tpu.memory_space<vmem>>, vector<4x16x16xf32>,
    %3 = vector.extract_strided_slice %0 {offsets = [0, 1, 0], sizes = [4, 1, 16], strides = [1, 1, 1]} : vector<4x16x16xf32> to vector<4x1x16xf32>
    %c0_7 = arith.constant 0 : index
    %c0_8 = arith.constant 0 : index
    %c1_9 = arith.constant 1 : index
    %4 = vector.load %arg4[%c0_7, %c0_8, %c1_9] : memref<4x18x18xf32, #tpu.memory_space<vmem>>, vector<4x1x16xf32>
    tpu.vector_store %arg4[%c0_7, %c0_8, %c1_9], %3 {strides = array<i32>} : memref<4x18x18xf32, #tpu.memory_space<vmem>>, vector<4x1x16xf32>,
    %5 = vector.extract_strided_slice %0 {offsets = [0, 14, 0], sizes = [4, 1, 16], strides = [1, 1, 1]} : vector<4x16x16xf32> to vector<4x1x16xf32>
    %c0_10 = arith.constant 0 : index
    %c17 = arith.constant 17 : index
    %c1_11 = arith.constant 1 : index
    %6 = vector.load %arg4[%c0_10, %c17, %c1_11] : memref<4x18x18xf32, #tpu.memory_space<vmem>>, vector<4x1x16xf32>
    tpu.vector_store %arg4[%c0_10, %c17, %c1_11], %5 {strides = array<i32>} : memref<4x18x18xf32, #tpu.memory_space<vmem>>, vector<4x1x16xf32>,
    %c0_12 = arith.constant 0 : index
    %c0_13 = arith.constant 0 : index
    %c2 = arith.constant 2 : index
    %7 = vector.load %arg4[%c0_12, %c0_13, %c2] : memref<4x18x18xf32, #tpu.memory_space<vmem>>, vector<4x18x1xf32>
    %c0_14 = arith.constant 0 : index
    %c0_15 = arith.constant 0 : index
    %c0_16 = arith.constant 0 : index
    %8 = vector.load %arg4[%c0_14, %c0_15, %c0_16] : memref<4x18x18xf32, #tpu.memory_space<vmem>>, vector<4x18x1xf32>
    tpu.vector_store %arg4[%c0_14, %c0_15, %c0_16], %7 {strides = array<i32>} : memref<4x18x18xf32, #tpu.memory_space<vmem>>, vector<4x18x1xf32>,
    %c0_17 = arith.constant 0 : index
    %c0_18 = arith.constant 0 : index
    %c15 = arith.constant 15 : index
    %9 = vector.load %arg4[%c0_17, %c0_18, %c15] : memref<4x18x18xf32, #tpu.memory_space<vmem>>, vector<4x18x1xf32>
    %c0_19 = arith.constant 0 : index
    %c0_20 = arith.constant 0 : index
    %c17_21 = arith.constant 17 : index
    %10 = vector.load %arg4[%c0_19, %c0_20, %c17_21] : memref<4x18x18xf32, #tpu.memory_space<vmem>>, vector<4x18x1xf32>
    tpu.vector_store %arg4[%c0_19, %c0_20, %c17_21], %9 {strides = array<i32>} : memref<4x18x18xf32, #tpu.memory_space<vmem>>, vector<4x18x1xf32>,
    %c0_22 = arith.constant 0 : index
    %c1_23 = arith.constant 1 : index
    %c1_24 = arith.constant 1 : index
    %11 = vector.load %arg5[%c0_22, %c1_23, %c1_24] : memref<4x18x18xf32, #tpu.memory_space<vmem>>, vector<4x16x16xf32>
    tpu.vector_store %arg5[%c0_22, %c1_23, %c1_24], %1 {strides = array<i32>} : memref<4x18x18xf32, #tpu.memory_space<vmem>>, vector<4x16x16xf32>,
    %12 = vector.extract_strided_slice %1 {offsets = [0, 1, 0], sizes = [4, 1, 16], strides = [1, 1, 1]} : vector<4x16x16xf32> to vector<4x1x16xf32>
    %c0_25 = arith.constant 0 : index
    %c0_26 = arith.constant 0 : index
    %c1_27 = arith.constant 1 : index
    %13 = vector.load %arg5[%c0_25, %c0_26, %c1_27] : memref<4x18x18xf32, #tpu.memory_space<vmem>>, vector<4x1x16xf32>
    tpu.vector_store %arg5[%c0_25, %c0_26, %c1_27], %12 {strides = array<i32>} : memref<4x18x18xf32, #tpu.memory_space<vmem>>, vector<4x1x16xf32>,
    %14 = vector.extract_strided_slice %1 {offsets = [0, 14, 0], sizes = [4, 1, 16], strides = [1, 1, 1]} : vector<4x16x16xf32> to vector<4x1x16xf32>
    %c0_28 = arith.constant 0 : index
    %c17_29 = arith.constant 17 : index
    %c1_30 = arith.constant 1 : index
    %15 = vector.load %arg5[%c0_28, %c17_29, %c1_30] : memref<4x18x18xf32, #tpu.memory_space<vmem>>, vector<4x1x16xf32>
    tpu.vector_store %arg5[%c0_28, %c17_29, %c1_30], %14 {strides = array<i32>} : memref<4x18x18xf32, #tpu.memory_space<vmem>>, vector<4x1x16xf32>,
    %c0_31 = arith.constant 0 : index
    %c0_32 = arith.constant 0 : index
    %c2_33 = arith.constant 2 : index
    %16 = vector.load %arg5[%c0_31, %c0_32, %c2_33] : memref<4x18x18xf32, #tpu.memory_space<vmem>>, vector<4x18x1xf32>
    %c0_34 = arith.constant 0 : index
    %c0_35 = arith.constant 0 : index
    %c0_36 = arith.constant 0 : index
    %17 = vector.load %arg5[%c0_34, %c0_35, %c0_36] : memref<4x18x18xf32, #tpu.memory_space<vmem>>, vector<4x18x1xf32>
    tpu.vector_store %arg5[%c0_34, %c0_35, %c0_36], %16 {strides = array<i32>} : memref<4x18x18xf32, #tpu.memory_space<vmem>>, vector<4x18x1xf32>,
    %c0_37 = arith.constant 0 : index
    %c0_38 = arith.constant 0 : index
    %c15_39 = arith.constant 15 : index
    %18 = vector.load %arg5[%c0_37, %c0_38, %c15_39] : memref<4x18x18xf32, #tpu.memory_space<vmem>>, vector<4x18x1xf32>
    %c0_40 = arith.constant 0 : index
    %c0_41 = arith.constant 0 : index
    %c17_42 = arith.constant 17 : index
    %19 = vector.load %arg5[%c0_40, %c0_41, %c17_42] : memref<4x18x18xf32, #tpu.memory_space<vmem>>, vector<4x18x1xf32>
    tpu.vector_store %arg5[%c0_40, %c0_41, %c17_42], %18 {strides = array<i32>} : memref<4x18x18xf32, #tpu.memory_space<vmem>>, vector<4x18x1xf32>,
    %c0_43 = arith.constant 0 : index
    %c0_44 = arith.constant 0 : index
    %c0_45 = arith.constant 0 : index
    %20 = vector.load %arg4[%c0_43, %c0_44, %c0_45] : memref<4x18x18xf32, #tpu.memory_space<vmem>>, vector<4x18x18xf32>
    %c0_46 = arith.constant 0 : index
    %c0_47 = arith.constant 0 : index
    %c0_48 = arith.constant 0 : index
    %21 = vector.load %arg5[%c0_46, %c0_47, %c0_48] : memref<4x18x18xf32, #tpu.memory_space<vmem>>, vector<4x18x18xf32>
    %22 = arith.mulf %20, %20 : vector<4x18x18xf32>
    %23 = arith.mulf %21, %21 : vector<4x18x18xf32>
    %24 = arith.mulf %20, %21 : vector<4x18x18xf32>
    %25 = vector.extract_strided_slice %20 {offsets = [0, 0, 0], sizes = [4, 16, 18], strides = [1, 1, 1]} : vector<4x18x18xf32> to vector<4x16x18xf32>
    %26 = vector.extract_strided_slice %20 {offsets = [0, 1, 0], sizes = [4, 16, 18], strides = [1, 1, 1]} : vector<4x18x18xf32> to vector<4x16x18xf32>
    %27 = arith.addf %25, %26 : vector<4x16x18xf32>
    %28 = vector.extract_strided_slice %20 {offsets = [0, 2, 0], sizes = [4, 16, 18], strides = [1, 1, 1]} : vector<4x18x18xf32> to vector<4x16x18xf32>
    %29 = arith.addf %27, %28 : vector<4x16x18xf32>
    %30 = vector.extract_strided_slice %29 {offsets = [0, 0, 0], sizes = [4, 16, 16], strides = [1, 1, 1]} : vector<4x16x18xf32> to vector<4x16x16xf32>
    %31 = vector.extract_strided_slice %29 {offsets = [0, 0, 1], sizes = [4, 16, 16], strides = [1, 1, 1]} : vector<4x16x18xf32> to vector<4x16x16xf32>
    %32 = arith.addf %30, %31 : vector<4x16x16xf32>
    %33 = vector.extract_strided_slice %29 {offsets = [0, 0, 2], sizes = [4, 16, 16], strides = [1, 1, 1]} : vector<4x16x18xf32> to vector<4x16x16xf32>
    %34 = arith.addf %32, %33 : vector<4x16x16xf32>
    %cst = arith.constant 0.111111112 : f32
    %35 = vector.broadcast %cst : f32 to vector<4x16x16xf32>
    %36 = arith.mulf %34, %35 : vector<4x16x16xf32>
    %37 = vector.extract_strided_slice %21 {offsets = [0, 0, 0], sizes = [4, 16, 18], strides = [1, 1, 1]} : vector<4x18x18xf32> to vector<4x16x18xf32>
    %38 = vector.extract_strided_slice %21 {offsets = [0, 1, 0], sizes = [4, 16, 18], strides = [1, 1, 1]} : vector<4x18x18xf32> to vector<4x16x18xf32>
    %39 = arith.addf %37, %38 : vector<4x16x18xf32>
    %40 = vector.extract_strided_slice %21 {offsets = [0, 2, 0], sizes = [4, 16, 18], strides = [1, 1, 1]} : vector<4x18x18xf32> to vector<4x16x18xf32>
    %41 = arith.addf %39, %40 : vector<4x16x18xf32>
    %42 = vector.extract_strided_slice %41 {offsets = [0, 0, 0], sizes = [4, 16, 16], strides = [1, 1, 1]} : vector<4x16x18xf32> to vector<4x16x16xf32>
    %43 = vector.extract_strided_slice %41 {offsets = [0, 0, 1], sizes = [4, 16, 16], strides = [1, 1, 1]} : vector<4x16x18xf32> to vector<4x16x16xf32>
    %44 = arith.addf %42, %43 : vector<4x16x16xf32>
    %45 = vector.extract_strided_slice %41 {offsets = [0, 0, 2], sizes = [4, 16, 16], strides = [1, 1, 1]} : vector<4x16x18xf32> to vector<4x16x16xf32>
    %46 = arith.addf %44, %45 : vector<4x16x16xf32>
    %cst_49 = arith.constant 0.111111112 : f32
    %47 = vector.broadcast %cst_49 : f32 to vector<4x16x16xf32>
    %48 = arith.mulf %46, %47 : vector<4x16x16xf32>
    %49 = vector.extract_strided_slice %22 {offsets = [0, 0, 0], sizes = [4, 16, 18], strides = [1, 1, 1]} : vector<4x18x18xf32> to vector<4x16x18xf32>
    %50 = vector.extract_strided_slice %22 {offsets = [0, 1, 0], sizes = [4, 16, 18], strides = [1, 1, 1]} : vector<4x18x18xf32> to vector<4x16x18xf32>
    %51 = arith.addf %49, %50 : vector<4x16x18xf32>
    %52 = vector.extract_strided_slice %22 {offsets = [0, 2, 0], sizes = [4, 16, 18], strides = [1, 1, 1]} : vector<4x18x18xf32> to vector<4x16x18xf32>
    %53 = arith.addf %51, %52 : vector<4x16x18xf32>
    %54 = vector.extract_strided_slice %53 {offsets = [0, 0, 0], sizes = [4, 16, 16], strides = [1, 1, 1]} : vector<4x16x18xf32> to vector<4x16x16xf32>
    %55 = vector.extract_strided_slice %53 {offsets = [0, 0, 1], sizes = [4, 16, 16], strides = [1, 1, 1]} : vector<4x16x18xf32> to vector<4x16x16xf32>
    %56 = arith.addf %54, %55 : vector<4x16x16xf32>
    %57 = vector.extract_strided_slice %53 {offsets = [0, 0, 2], sizes = [4, 16, 16], strides = [1, 1, 1]} : vector<4x16x18xf32> to vector<4x16x16xf32>
    %58 = arith.addf %56, %57 : vector<4x16x16xf32>
    %cst_50 = arith.constant 0.111111112 : f32
    %59 = vector.broadcast %cst_50 : f32 to vector<4x16x16xf32>
    %60 = arith.mulf %58, %59 : vector<4x16x16xf32>
    %61 = vector.extract_strided_slice %23 {offsets = [0, 0, 0], sizes = [4, 16, 18], strides = [1, 1, 1]} : vector<4x18x18xf32> to vector<4x16x18xf32>
    %62 = vector.extract_strided_slice %23 {offsets = [0, 1, 0], sizes = [4, 16, 18], strides = [1, 1, 1]} : vector<4x18x18xf32> to vector<4x16x18xf32>
    %63 = arith.addf %61, %62 : vector<4x16x18xf32>
    %64 = vector.extract_strided_slice %23 {offsets = [0, 2, 0], sizes = [4, 16, 18], strides = [1, 1, 1]} : vector<4x18x18xf32> to vector<4x16x18xf32>
    %65 = arith.addf %63, %64 : vector<4x16x18xf32>
    %66 = vector.extract_strided_slice %65 {offsets = [0, 0, 0], sizes = [4, 16, 16], strides = [1, 1, 1]} : vector<4x16x18xf32> to vector<4x16x16xf32>
    %67 = vector.extract_strided_slice %65 {offsets = [0, 0, 1], sizes = [4, 16, 16], strides = [1, 1, 1]} : vector<4x16x18xf32> to vector<4x16x16xf32>
    %68 = arith.addf %66, %67 : vector<4x16x16xf32>
    %69 = vector.extract_strided_slice %65 {offsets = [0, 0, 2], sizes = [4, 16, 16], strides = [1, 1, 1]} : vector<4x16x18xf32> to vector<4x16x16xf32>
    %70 = arith.addf %68, %69 : vector<4x16x16xf32>
    %cst_51 = arith.constant 0.111111112 : f32
    %71 = vector.broadcast %cst_51 : f32 to vector<4x16x16xf32>
    %72 = arith.mulf %70, %71 : vector<4x16x16xf32>
    %73 = vector.extract_strided_slice %24 {offsets = [0, 0, 0], sizes = [4, 16, 18], strides = [1, 1, 1]} : vector<4x18x18xf32> to vector<4x16x18xf32>
    %74 = vector.extract_strided_slice %24 {offsets = [0, 1, 0], sizes = [4, 16, 18], strides = [1, 1, 1]} : vector<4x18x18xf32> to vector<4x16x18xf32>
    %75 = arith.addf %73, %74 : vector<4x16x18xf32>
    %76 = vector.extract_strided_slice %24 {offsets = [0, 2, 0], sizes = [4, 16, 18], strides = [1, 1, 1]} : vector<4x18x18xf32> to vector<4x16x18xf32>
    %77 = arith.addf %75, %76 : vector<4x16x18xf32>
    %78 = vector.extract_strided_slice %77 {offsets = [0, 0, 0], sizes = [4, 16, 16], strides = [1, 1, 1]} : vector<4x16x18xf32> to vector<4x16x16xf32>
    %79 = vector.extract_strided_slice %77 {offsets = [0, 0, 1], sizes = [4, 16, 16], strides = [1, 1, 1]} : vector<4x16x18xf32> to vector<4x16x16xf32>
    %80 = arith.addf %78, %79 : vector<4x16x16xf32>
    %81 = vector.extract_strided_slice %77 {offsets = [0, 0, 2], sizes = [4, 16, 16], strides = [1, 1, 1]} : vector<4x16x18xf32> to vector<4x16x16xf32>
    %82 = arith.addf %80, %81 : vector<4x16x16xf32>
    %cst_52 = arith.constant 0.111111112 : f32
    %83 = vector.broadcast %cst_52 : f32 to vector<4x16x16xf32>
    %84 = arith.mulf %82, %83 : vector<4x16x16xf32>
    %85 = arith.mulf %36, %36 : vector<4x16x16xf32>
    %86 = arith.subf %60, %85 : vector<4x16x16xf32>
    %87 = arith.mulf %48, %48 : vector<4x16x16xf32>
    %88 = arith.subf %72, %87 : vector<4x16x16xf32>
    %89 = arith.mulf %36, %48 : vector<4x16x16xf32>
    %90 = arith.subf %84, %89 : vector<4x16x16xf32>
    %cst_53 = arith.constant 2.000000e+00 : f32
    %91 = vector.broadcast %cst_53 : f32 to vector<4x16x16xf32>
    %92 = arith.mulf %91, %36 : vector<4x16x16xf32>
    %93 = arith.mulf %92, %48 : vector<4x16x16xf32>
    %cst_54 = arith.constant 9.99999974E-5 : f32
    %94 = vector.broadcast %cst_54 : f32 to vector<4x16x16xf32>
    %95 = arith.addf %93, %94 : vector<4x16x16xf32>
    %cst_55 = arith.constant 2.000000e+00 : f32
    %96 = vector.broadcast %cst_55 : f32 to vector<4x16x16xf32>
    %97 = arith.mulf %96, %90 : vector<4x16x16xf32>
    %cst_56 = arith.constant 8.99999984E-4 : f32
    %98 = vector.broadcast %cst_56 : f32 to vector<4x16x16xf32>
    %99 = arith.addf %97, %98 : vector<4x16x16xf32>
    %100 = arith.mulf %95, %99 : vector<4x16x16xf32>
    %101 = arith.mulf %36, %36 : vector<4x16x16xf32>
    %102 = arith.mulf %48, %48 : vector<4x16x16xf32>
    %103 = arith.addf %101, %102 : vector<4x16x16xf32>
    %cst_57 = arith.constant 9.99999974E-5 : f32
    %104 = vector.broadcast %cst_57 : f32 to vector<4x16x16xf32>
    %105 = arith.addf %103, %104 : vector<4x16x16xf32>
    %106 = arith.addf %86, %88 : vector<4x16x16xf32>
    %cst_58 = arith.constant 8.99999984E-4 : f32
    %107 = vector.broadcast %cst_58 : f32 to vector<4x16x16xf32>
    %108 = arith.addf %106, %107 : vector<4x16x16xf32>
    %109 = arith.mulf %105, %108 : vector<4x16x16xf32>
    %110 = tpu.reciprocal %109 {approx = true} : vector<4x16x16xf32> -> vector<4x16x16xf32>
    %111 = arith.mulf %100, %110 : vector<4x16x16xf32>
    %cst_59 = arith.constant 1.000000e+00 : f32
    %112 = vector.broadcast %cst_59 : f32 to vector<4x16x16xf32>
    %113 = arith.subf %112, %111 : vector<4x16x16xf32>
    %cst_60 = arith.constant 5.000000e-01 : f32
    %114 = vector.broadcast %cst_60 : f32 to vector<4x16x16xf32>
    %115 = arith.mulf %113, %114 : vector<4x16x16xf32>
    %cst_61 = arith.constant 0.000000e+00 : f32
    %cst_62 = arith.constant 1.000000e+00 : f32
    %116 = vector.broadcast %cst_61 : f32 to vector<4x16x16xf32>
    %117 = arith.maximumf %116, %115 : vector<4x16x16xf32>
    %118 = vector.broadcast %cst_62 : f32 to vector<4x16x16xf32>
    %119 = arith.minimumf %118, %117 : vector<4x16x16xf32>
    %c0_63 = arith.constant 0 : index
    %c0_64 = arith.constant 0 : index
    %c0_65 = arith.constant 0 : index
    %120 = vector.load %arg3[%c0_63, %c0_64, %c0_65] : memref<4x16x16xf32, #tpu.memory_space<vmem>>, vector<4x16x16xf32>
    tpu.vector_store %arg3[%c0_63, %c0_64, %c0_65], %119 {strides = array<i32>} : memref<4x16x16xf32, #tpu.memory_space<vmem>>, vector<4x16x16xf32>,
    return
  }
  func.func @transform_0(%arg0: i32) -> (i32, i32, i32) {
    %c0_i32 = arith.constant 0 : i32
    %c0_i32_0 = arith.constant 0 : i32
    %c0_i32_1 = arith.constant 0 : i32
    return %arg0, %c0_i32, %c0_i32_0 : i32, i32, i32
  }
  func.func @transform_1(%arg0: i32) -> (i32, i32, i32) {
    %c0_i32 = arith.constant 0 : i32
    %c0_i32_0 = arith.constant 0 : i32
    %c0_i32_1 = arith.constant 0 : i32
    return %arg0, %c0_i32, %c0_i32_0 : i32, i32, i32
  }
  func.func @transform_2(%arg0: i32) -> (i32, i32, i32) {
    %c0_i32 = arith.constant 0 : i32
    %c0_i32_0 = arith.constant 0 : i32
    %c0_i32_1 = arith.constant 0 : i32
    return %arg0, %c0_i32, %c0_i32_0 : i32, i32, i32
  }
}

</mosaic_0001>

<llo_original>
// kernel: tpu_custom_call.1
$region0: #{tpu_custom_call.1}
  #allocation0 [shape = 'u32[]', space=smem, size = 0x4, offset = 0x4, fixed_abs, tag = 'smem constant byte address 0x4 - core index']
  #allocation1 [shape = 'u32[72,128]{1,0:T(1,128)}', space=vmem, size = 0x9000, scoped, tag = 'internal scratch']
  #allocation2 [shape = 'f32[4,18,18]{2,1,0:T(8,128)}', space=vmem, size = 0xc000, scoped, tag = 'scratch operand']
  #allocation3 [shape = 'f32[4,18,18]{2,1,0:T(8,128)}', space=vmem, size = 0xc000, scoped, tag = 'scratch operand']
  %s0 = inlined_call_operand.hbm [shape: f32[8,16,16], index: 0, kind: input, shape index: {}]
  %s1 = inlined_call_operand.hbm [shape: f32[8,16,16], index: 1, kind: input, shape index: {}]
  %s2 = inlined_call_operand.hbm [shape: f32[8,16,16], index: 2, kind: output, shape index: {}]
  %s3 = sld [smem:[#allocation0]]
  $region49: #{tpu_custom_call.1} parent=0
    _
  %s5 = ssub.s32 1, %s3
  %s6 = scalar_select 0, %s5, %s3
  $region1: #{tpu_custom_call.1} parent=0
    #allocation4 [shape = 'u8[65536]{0}', space=vmem, size = 0x10000, scoped, tag = 'input window, operand 0']
    #allocation5 [shape = 's32[2]{0}', space=sflag, size = 0x8, scoped, tag = 'scoped memory for tpu_custom_call.1']
    #allocation6 [shape = 's32[2]{0}', space=sflag, size = 0x8, scoped, tag = 'scoped memory for tpu_custom_call.1']
    #allocation7 [shape = 'u8[65536]{0}', space=vmem, size = 0x10000, scoped, tag = 'input window, operand 1']
    #allocation8 [shape = 's32[2]{0}', space=sflag, size = 0x8, scoped, tag = 'scoped memory for tpu_custom_call.1']
    #allocation9 [shape = 'u8[65536]{0}', space=vmem, size = 0x10000, scoped, tag = 'output window, operand 0']
    %7 = vsyncpa [#allocation5], 0
    %s8 = scalar_lea.sflag [#allocation5], 1
    %9 = vsyncpa %s8, 0
    %10 = vsyncpa [#allocation8], 0
    %s11 = scalar_lea.sflag [#allocation8], 1
    %12 = vsyncpa %s11, 0
    %13 = vsyncpa [#allocation6], 0
    %s14 = scalar_lea.sflag [#allocation6], 1
    %15 = vsyncpa %s14, 0
    loop: start=0, step=1, limit=4
    $region2: #{tpu_custom_call.1} parent=1 // loop_pre_header
      _
    $region3: #{tpu_custom_call.1} parent=1 // loop_header
      %s17 = sphi 0, %s21
      %p18 = scmp.ge.s32.totalorder %s17, 4
      %s27 = sphi 0, %s29
      %s30 = sphi 0, %s27
      %s31 = sphi 0, %s30
      %s47 = sphi 0, %s31
      %s53 = sphi 0, %s55
      %s56 = sphi 0, %s53
      %s57 = sphi 0, %s56
      %s73 = sphi 0, %s57
      %s79 = sphi 0, %s81
      %s82 = sphi 0, %s79
      %s83 = sphi 0, %s82
      %s99 = sphi 0, %s83
    $region4: #{tpu_custom_call.1} parent=1 // loop_header_branch
      %20 = sbr.rel (%p18) target = $region8
    $region5: #{tpu_custom_call.1} parent=1 // loop_body
      %s22 = ssub.s32 %s17, 1
      %s23 = ssub.s32 %s17, 2
      %s24 = sadd.s32 %s17, 1
      %s25 = ssub.s32 %s17, %s24
      %p26 = scmp.eq.s32.totalorder %s25, 0
      %s28 = sadd.s32 %s27, 1
      %s29 = scalar_select %p26, %s27, %s28
      %p32 = pneg %p26
      %p33 = scmp.eq.s32.totalorder %s17, 1
      %p34 = por %p32, %p33
      %p35 = scmp.ne.s32.totalorder %s27, %s30
      %p36 = scmp.eq.s32.totalorder %s17, 0
      %p37 = por %p35, %p36
      %p38 = scmp.ne.s32.totalorder %s27, %s30
      %p39 = scmp.eq.s32.totalorder %s22, 1
      %p40 = por %p38, %p39
      %p41 = scmp.ne.s32.totalorder %s30, %s31
      %p42 = scmp.eq.s32.totalorder %s22, 0
      %p43 = por %p41, %p42
      %p44 = scmp.ne.s32.totalorder %s30, %s31
      %p45 = scmp.eq.s32.totalorder %s23, 1
      %p46 = por %p44, %p45
      %p48 = scmp.ne.s32.totalorder %s31, %s47
      %p49 = scmp.eq.s32.totalorder %s23, 0
      %p50 = por %p48, %p49
      %s51 = ssub.s32 %s17, %s24
      %p52 = scmp.eq.s32.totalorder %s51, 0
      %s54 = sadd.s32 %s53, 1
      %s55 = scalar_select %p52, %s53, %s54
      %p58 = pneg %p52
      %p59 = scmp.eq.s32.totalorder %s17, 1
      %p60 = por %p58, %p59
      %p61 = scmp.ne.s32.totalorder %s53, %s56
      %p62 = scmp.eq.s32.totalorder %s17, 0
      %p63 = por %p61, %p62
      %p64 = scmp.ne.s32.totalorder %s53, %s56
      %p65 = scmp.eq.s32.totalorder %s22, 1
      %p66 = por %p64, %p65
      %p67 = scmp.ne.s32.totalorder %s56, %s57
      %p68 = scmp.eq.s32.totalorder %s22, 0
      %p69 = por %p67, %p68
      %p70 = scmp.ne.s32.totalorder %s56, %s57
      %p71 = scmp.eq.s32.totalorder %s23, 1
      %p72 = por %p70, %p71
      %p74 = scmp.ne.s32.totalorder %s57, %s73
      %p75 = scmp.eq.s32.totalorder %s23, 0
      %p76 = por %p74, %p75
      %s77 = ssub.s32 %s17, %s24
      %p78 = scmp.eq.s32.totalorder %s77, 0
      %s80 = sadd.s32 %s79, 1
      %s81 = scalar_select %p78, %s79, %s80
      %p84 = pneg %p78
      %p85 = scmp.eq.s32.totalorder %s17, 1
      %p86 = por %p84, %p85
      %p87 = scmp.ne.s32.totalorder %s79, %s82
      %p88 = scmp.eq.s32.totalorder %s17, 0
      %p89 = por %p87, %p88
      %p90 = scmp.ne.s32.totalorder %s79, %s82
      %p91 = scmp.eq.s32.totalorder %s22, 1
      %p92 = por %p90, %p91
      %p93 = scmp.ne.s32.totalorder %s82, %s83
      %p94 = scmp.eq.s32.totalorder %s22, 0
      %p95 = por %p93, %p94
      %p96 = scmp.ne.s32.totalorder %s82, %s83
      %p97 = scmp.eq.s32.totalorder %s23, 1
      %p98 = por %p96, %p97
      %p100 = scmp.ne.s32.totalorder %s83, %s99
      %p101 = scmp.eq.s32.totalorder %s23, 0
      %p102 = por %p100, %p101
      %p103 = scmp.le.s32.totalorder 1, %s17
      %p104 = scmp.lt.s32.totalorder %s17, 3
      %p105 = pnand %p103, %p104
      %p106 = pneg %p105
      // Predicated region
      $region9: #{tpu_custom_call.1} parent=5 // pred_check
        _
      $region10: #{tpu_custom_call.1} parent=5 // pred_check_branch
        %108 = sbr.rel (%p105) target = $region12
      $region11: #{tpu_custom_call.1} parent=5 // pred_region
        %s109 = ssub.s32 %s17, 1
      $region12: #{tpu_custom_call.1} parent=5 // pred_fallthru
        _
      %p110 = scmp.lt.s32.totalorder %s17, 2
      // Predicated region
      $region13: #{tpu_custom_call.1} parent=5 // pred_check
        %p111 = pneg %p110
      $region14: #{tpu_custom_call.1} parent=5 // pred_check_branch
        %113 = sbr.rel (%p111) target = $region16
      $region15: #{tpu_custom_call.1} parent=5 // pred_region
        // Predicated region
        $region17: #{tpu_custom_call.1} parent=15 // pred_check
          %p114 = pneg %p37
        $region18: #{tpu_custom_call.1} parent=15 // pred_check_branch
          %116 = sbr.rel (%p114) target = $region20
        $region19: #{tpu_custom_call.1} parent=15 // pred_region
          %s117 = sand.u32 %s27, 1
          %s118 = scalar_lea.sflag [#allocation5], %s117
          %s119 = sand.u32 %s27, 1
          %s120 = smul.addr %s119, 64
          %s121 = scalar_lea.vmem [#allocation4], %s120
          %s122 = smul.u32 4, %s17
          %124 = vsyncadd %s118, 0
          %s125 = smul.addr %s122, 2
          %s126 = smul.addr %s125, 8
          %s127 = scalar_lea.hbm %s0, %s126
          %s128 = sshll.u32 %s127, 4
          %s129 = int_to_ptr.hbm [resolvable:$true] %s128
          %s130 = sshll.u32 %s121, 4
          %s131 = int_to_ptr.vmem [resolvable:$true] %s130
          %136 = dma.hbm_to_vmem [thread:$0]  %s129, 1024, %s131, %s118, 128, 128, 8
        $region20: #{tpu_custom_call.1} parent=15 // pred_fallthru
          _
        // Predicated region
        $region21: #{tpu_custom_call.1} parent=15 // pred_check
          %p137 = pneg %p63
        $region22: #{tpu_custom_call.1} parent=15 // pred_check_branch
          %139 = sbr.rel (%p137) target = $region24
        $region23: #{tpu_custom_call.1} parent=15 // pred_region
          %s140 = sand.u32 %s53, 1
          %s141 = scalar_lea.sflag [#allocation8], %s140
          %s142 = sand.u32 %s53, 1
          %s143 = smul.addr %s142, 64
          %s144 = scalar_lea.vmem [#allocation7], %s143
          %s145 = smul.u32 4, %s17
          %147 = vsyncadd %s141, 0
          %s148 = smul.addr %s145, 2
          %s149 = smul.addr %s148, 8
          %s150 = scalar_lea.hbm %s1, %s149
          %s151 = sshll.u32 %s150, 4
          %s152 = int_to_ptr.hbm [resolvable:$true] %s151
          %s153 = sshll.u32 %s144, 4
          %s154 = int_to_ptr.vmem [resolvable:$true] %s153
          %159 = dma.hbm_to_vmem [thread:$0]  %s152, 1024, %s154, %s141, 128, 128, 8
        $region24: #{tpu_custom_call.1} parent=15 // pred_fallthru
          _
      $region16: #{tpu_custom_call.1} parent=5 // pred_fallthru
        _
      %p160 = scmp.le.s32.totalorder 1, %s17
      %p161 = scmp.lt.s32.totalorder %s17, 3
      %p162 = pnand %p160, %p161
      %p163 = pneg %p162
      // Predicated region
      $region25: #{tpu_custom_call.1} parent=5 // pred_check
        _
      $region26: #{tpu_custom_call.1} parent=5 // pred_check_branch
        %165 = sbr.rel (%p162) target = $region28
      $region27: #{tpu_custom_call.1} parent=5 // pred_region
        %s166 = ssub.s32 %s17, 1
        %s167 = sand.u32 %s30, 1
        %s168 = scalar_lea.sflag [#allocation5], %s167
        %s169 = sand.u32 %s30, 1
        %s170 = smul.addr %s169, 64
        %s171 = scalar_lea.vmem [#allocation4], %s170
        // Predicated region
        $region29: #{tpu_custom_call.1} parent=27 // pred_check
          %p172 = pneg %p43
        $region30: #{tpu_custom_call.1} parent=27 // pred_check_branch
          %174 = sbr.rel (%p172) target = $region32
        $region31: #{tpu_custom_call.1} parent=27 // pred_region
          %176 = dma.done %s168, 1024
        $region32: #{tpu_custom_call.1} parent=27 // pred_fallthru
          _
        %s177 = sand.u32 %s56, 1
        %s178 = scalar_lea.sflag [#allocation8], %s177
        %s179 = sand.u32 %s56, 1
        %s180 = smul.addr %s179, 64
        %s181 = scalar_lea.vmem [#allocation7], %s180
        // Predicated region
        $region33: #{tpu_custom_call.1} parent=27 // pred_check
          %p182 = pneg %p69
        $region34: #{tpu_custom_call.1} parent=27 // pred_check_branch
          %184 = sbr.rel (%p182) target = $region36
        $region35: #{tpu_custom_call.1} parent=27 // pred_region
          %186 = dma.done %s178, 1024
        $region36: #{tpu_custom_call.1} parent=27 // pred_fallthru
          _
        %s187 = sand.u32 %s30, 1
        %s188 = scalar_lea.sflag [#allocation5], %s187
        %s189 = sand.u32 %s30, 1
        %s190 = smul.addr %s189, 64
        %s191 = scalar_lea.vmem [#allocation4], %s190
        %p192 = pneg %p43
        %p193 = pneg %p40
        %s194 = sand.u32 %s56, 1
        %s195 = scalar_lea.sflag [#allocation8], %s194
        %s196 = sand.u32 %s56, 1
        %s197 = smul.addr %s196, 64
        %s198 = scalar_lea.vmem [#allocation7], %s197
        %p199 = pneg %p69
        %p200 = pneg %p66
        %p201 = pneg %p95
        %p202 = pneg %p92
        %s203 = sand.u32 %s82, 1
        %s204 = scalar_lea.sflag [#allocation6], %s203
        %s205 = sand.u32 %s82, 1
        %s206 = smul.addr %s205, 64
        %s207 = scalar_lea.vmem [#allocation9], %s206
        %s208 = smul.u32 4, %s22
        %s209 = smul.u32 4, %s22
        %s210 = smul.u32 4, %s22
        %v211 = vld [vmem:[%s171] sm:$0xff]
        %v212 = vld [vmem:[%s171 + $0x8] sm:$0xff]
        %v213 = vld [vmem:[%s171 + $0x10] sm:$0xff]
        %v214 = vld [vmem:[%s171 + $0x18] sm:$0xff]
        %v215 = vld [vmem:[%s171 + $0x20] sm:$0xff]
        %v216 = vld [vmem:[%s171 + $0x28] sm:$0xff]
        %v217 = vld [vmem:[%s171 + $0x30] sm:$0xff]
        %v218 = vld [vmem:[%s171 + $0x38] sm:$0xff]
        %v219 = vld [vmem:[%s181] sm:$0xff]
        %v220 = vld [vmem:[%s181 + $0x8] sm:$0xff]
        %v221 = vld [vmem:[%s181 + $0x10] sm:$0xff]
        %v222 = vld [vmem:[%s181 + $0x18] sm:$0xff]
        %v223 = vld [vmem:[%s181 + $0x20] sm:$0xff]
        %v224 = vld [vmem:[%s181 + $0x28] sm:$0xff]
        %v225 = vld [vmem:[%s181 + $0x30] sm:$0xff]
        %v226 = vld [vmem:[%s181 + $0x38] sm:$0xff]
        %235 = vrot.lane.b32.xlu0 %v211, 1
        %v236 = vpop.permute.xlu0 %235
        %237 = vrot.lane.b32.xlu0 %v212, 1
        %v238 = vpop.permute.xlu0 %237
        %239 = vrot.lane.b32.xlu0 %v213, 1
        %v240 = vpop.permute.xlu0 %239
        %241 = vrot.lane.b32.xlu0 %v214, 1
        %v242 = vpop.permute.xlu0 %241
        %243 = vrot.lane.b32.xlu0 %v215, 1
        %v244 = vpop.permute.xlu0 %243
        %245 = vrot.lane.b32.xlu0 %v216, 1
        %v246 = vpop.permute.xlu0 %245
        %247 = vrot.lane.b32.xlu0 %v217, 1
        %v248 = vpop.permute.xlu0 %247
        %249 = vrot.lane.b32.xlu0 %v218, 1
        %v250 = vpop.permute.xlu0 %249
        %vm259 = vcmask 138248
        %260 = vst.msk [vmem:[#allocation2 + $0x1] sm:$0xff] %vm259, %v236
        %261 = vst.msk [vmem:[#allocation2 + $0x9] sm:$0xff] %vm259, %v238
        %262 = vst.msk [vmem:[#allocation2 + $0x19] sm:$0xff] %vm259, %v240
        %263 = vst.msk [vmem:[#allocation2 + $0x21] sm:$0xff] %vm259, %v242
        %264 = vst.msk [vmem:[#allocation2 + $0x31] sm:$0xff] %vm259, %v244
        %265 = vst.msk [vmem:[#allocation2 + $0x39] sm:$0xff] %vm259, %v246
        %266 = vst.msk [vmem:[#allocation2 + $0x49] sm:$0xff] %vm259, %v248
        %267 = vst.msk [vmem:[#allocation2 + $0x51] sm:$0xff] %vm259, %v250
        %vm268 = vcmask 132105
        %269 = vst.msk [vmem:[#allocation2 - $0x1] sm:$0x2] %vm268, %v236
        %270 = vst.msk [vmem:[#allocation2 + $0x17] sm:$0x2] %vm268, %v240
        %271 = vst.msk [vmem:[#allocation2 + $0x2f] sm:$0x2] %vm268, %v244
        %272 = vst.msk [vmem:[#allocation2 + $0x47] sm:$0x2] %vm268, %v248
        %vm273 = vcmask 137230
        %274 = vst.msk [vmem:[#allocation2 + $0xb] sm:$0x40] %vm273, %v238
        %275 = vst.msk [vmem:[#allocation2 + $0x23] sm:$0x40] %vm273, %v242
        %276 = vst.msk [vmem:[#allocation2 + $0x3b] sm:$0x40] %vm273, %v246
        %277 = vst.msk [vmem:[#allocation2 + $0x53] sm:$0x40] %vm273, %v250
        %v278 = vld [vmem:[#allocation2] sm:$0xff]
        %v279 = vld [vmem:[#allocation2 + $0x8] sm:$0xff]
        %v280 = vld [vmem:[#allocation2 + $0x10] sm:$0x3]
        %v281 = vld [vmem:[#allocation2 + $0x18] sm:$0xff]
        %v282 = vld [vmem:[#allocation2 + $0x20] sm:$0xff]
        %v283 = vld [vmem:[#allocation2 + $0x28] sm:$0x3]
        %v284 = vld [vmem:[#allocation2 + $0x30] sm:$0xff]
        %v285 = vld [vmem:[#allocation2 + $0x38] sm:$0xff]
        %v286 = vld [vmem:[#allocation2 + $0x40] sm:$0x3]
        %v287 = vld [vmem:[#allocation2 + $0x48] sm:$0xff]
        %v288 = vld [vmem:[#allocation2 + $0x50] sm:$0xff]
        %v289 = vld [vmem:[#allocation2 + $0x58] sm:$0x3]
        %302 = vrot.lane.b32.xlu0 %v278, 126
        %v303 = vpop.permute.xlu0 %302
        %304 = vrot.lane.b32.xlu0 %v279, 126
        %v305 = vpop.permute.xlu0 %304
        %306 = vrot.lane.b32.xlu0 %v280, 126
        %v307 = vpop.permute.xlu0 %306
        %308 = vrot.lane.b32.xlu0 %v281, 126
        %v309 = vpop.permute.xlu0 %308
        %310 = vrot.lane.b32.xlu0 %v282, 126
        %v311 = vpop.permute.xlu0 %310
        %312 = vrot.lane.b32.xlu0 %v283, 126
        %v313 = vpop.permute.xlu0 %312
        %314 = vrot.lane.b32.xlu0 %v284, 126
        %v315 = vpop.permute.xlu0 %314
        %316 = vrot.lane.b32.xlu0 %v285, 126
        %v317 = vpop.permute.xlu0 %316
        %318 = vrot.lane.b32.xlu0 %v286, 126
        %v319 = vpop.permute.xlu0 %318
        %320 = vrot.lane.b32.xlu0 %v287, 126
        %v321 = vpop.permute.xlu0 %320
        %322 = vrot.lane.b32.xlu0 %v288, 126
        %v323 = vpop.permute.xlu0 %322
        %324 = vrot.lane.b32.xlu0 %v289, 126
        %v325 = vpop.permute.xlu0 %324
        %vm338 = vcmask 7168
        %339 = vst.msk [vmem:[#allocation2] sm:$0xff] %vm338, %v303
        %340 = vst.msk [vmem:[#allocation2 + $0x8] sm:$0xff] %vm338, %v305
        %vm341 = vcmask 1024
        %342 = vst.msk [vmem:[#allocation2 + $0x10] sm:$0x3] %vm341, %v307
        %343 = vst.msk [vmem:[#allocation2 + $0x18] sm:$0xff] %vm338, %v309
        %344 = vst.msk [vmem:[#allocation2 + $0x20] sm:$0xff] %vm338, %v311
        %345 = vst.msk [vmem:[#allocation2 + $0x28] sm:$0x3] %vm341, %v313
        %346 = vst.msk [vmem:[#allocation2 + $0x30] sm:$0xff] %vm338, %v315
        %347 = vst.msk [vmem:[#allocation2 + $0x38] sm:$0xff] %vm338, %v317
        %348 = vst.msk [vmem:[#allocation2 + $0x40] sm:$0x3] %vm341, %v319
        %349 = vst.msk [vmem:[#allocation2 + $0x48] sm:$0xff] %vm338, %v321
        %350 = vst.msk [vmem:[#allocation2 + $0x50] sm:$0xff] %vm338, %v323
        %351 = vst.msk [vmem:[#allocation2 + $0x58] sm:$0x3] %vm341, %v325
        %v352 = vld [vmem:[#allocation2] sm:$0xff]
        %v353 = vld [vmem:[#allocation2 + $0x8] sm:$0xff]
        %v354 = vld [vmem:[#allocation2 + $0x10] sm:$0x3]
        %v355 = vld [vmem:[#allocation2 + $0x18] sm:$0xff]
        %v356 = vld [vmem:[#allocation2 + $0x20] sm:$0xff]
        %v357 = vld [vmem:[#allocation2 + $0x28] sm:$0x3]
        %v358 = vld [vmem:[#allocation2 + $0x30] sm:$0xff]
        %v359 = vld [vmem:[#allocation2 + $0x38] sm:$0xff]
        %v360 = vld [vmem:[#allocation2 + $0x40] sm:$0x3]
        %v361 = vld [vmem:[#allocation2 + $0x48] sm:$0xff]
        %v362 = vld [vmem:[#allocation2 + $0x50] sm:$0xff]
        %v363 = vld [vmem:[#allocation2 + $0x58] sm:$0x3]
        %376 = vrot.lane.b32.xlu0 %v352, 2
        %v377 = vpop.permute.xlu0 %376
        %378 = vrot.lane.b32.xlu0 %v353, 2
        %v379 = vpop.permute.xlu0 %378
        %380 = vrot.lane.b32.xlu0 %v354, 2
        %v381 = vpop.permute.xlu0 %380
        %382 = vrot.lane.b32.xlu0 %v355, 2
        %v383 = vpop.permute.xlu0 %382
        %384 = vrot.lane.b32.xlu0 %v356, 2
        %v385 = vpop.permute.xlu0 %384
        %386 = vrot.lane.b32.xlu0 %v357, 2
        %v387 = vpop.permute.xlu0 %386
        %388 = vrot.lane.b32.xlu0 %v358, 2
        %v389 = vpop.permute.xlu0 %388
        %390 = vrot.lane.b32.xlu0 %v359, 2
        %v391 = vpop.permute.xlu0 %390
        %392 = vrot.lane.b32.xlu0 %v360, 2
        %v393 = vpop.permute.xlu0 %392
        %394 = vrot.lane.b32.xlu0 %v361, 2
        %v395 = vpop.permute.xlu0 %394
        %396 = vrot.lane.b32.xlu0 %v362, 2
        %v397 = vpop.permute.xlu0 %396
        %398 = vrot.lane.b32.xlu0 %v363, 2
        %v399 = vpop.permute.xlu0 %398
        %vm412 = vcmask 146568
        %413 = vst.msk [vmem:[#allocation2] sm:$0xff] %vm412, %v377
        %414 = vst.msk [vmem:[#allocation2 + $0x8] sm:$0xff] %vm412, %v379
        %vm415 = vcmask 140424
        %416 = vst.msk [vmem:[#allocation2 + $0x10] sm:$0x3] %vm415, %v381
        %417 = vst.msk [vmem:[#allocation2 + $0x18] sm:$0xff] %vm412, %v383
        %418 = vst.msk [vmem:[#allocation2 + $0x20] sm:$0xff] %vm412, %v385
        %419 = vst.msk [vmem:[#allocation2 + $0x28] sm:$0x3] %vm415, %v387
        %420 = vst.msk [vmem:[#allocation2 + $0x30] sm:$0xff] %vm412, %v389
        %421 = vst.msk [vmem:[#allocation2 + $0x38] sm:$0xff] %vm412, %v391
        %422 = vst.msk [vmem:[#allocation2 + $0x40] sm:$0x3] %vm415, %v393
        %423 = vst.msk [vmem:[#allocation2 + $0x48] sm:$0xff] %vm412, %v395
        %424 = vst.msk [vmem:[#allocation2 + $0x50] sm:$0xff] %vm412, %v397
        %425 = vst.msk [vmem:[#allocation2 + $0x58] sm:$0x3] %vm415, %v399
        %434 = vrot.lane.b32.xlu0 %v219, 1
        %v435 = vpop.permute.xlu0 %434
        %436 = vrot.lane.b32.xlu0 %v220, 1
        %v437 = vpop.permute.xlu0 %436
        %438 = vrot.lane.b32.xlu0 %v221, 1
        %v439 = vpop.permute.xlu0 %438
        %440 = vrot.lane.b32.xlu0 %v222, 1
        %v441 = vpop.permute.xlu0 %440
        %442 = vrot.lane.b32.xlu0 %v223, 1
        %v443 = vpop.permute.xlu0 %442
        %444 = vrot.lane.b32.xlu0 %v224, 1
        %v445 = vpop.permute.xlu0 %444
        %446 = vrot.lane.b32.xlu0 %v225, 1
        %v447 = vpop.permute.xlu0 %446
        %448 = vrot.lane.b32.xlu0 %v226, 1
        %v449 = vpop.permute.xlu0 %448
        %458 = vst.msk [vmem:[#allocation3 + $0x1] sm:$0xff] %vm259, %v435
        %459 = vst.msk [vmem:[#allocation3 + $0x9] sm:$0xff] %vm259, %v437
        %460 = vst.msk [vmem:[#allocation3 + $0x19] sm:$0xff] %vm259, %v439
        %461 = vst.msk [vmem:[#allocation3 + $0x21] sm:$0xff] %vm259, %v441
        %462 = vst.msk [vmem:[#allocation3 + $0x31] sm:$0xff] %vm259, %v443
        %463 = vst.msk [vmem:[#allocation3 + $0x39] sm:$0xff] %vm259, %v445
        %464 = vst.msk [vmem:[#allocation3 + $0x49] sm:$0xff] %vm259, %v447
        %465 = vst.msk [vmem:[#allocation3 + $0x51] sm:$0xff] %vm259, %v449
        %466 = vst.msk [vmem:[#allocation3 - $0x1] sm:$0x2] %vm268, %v435
        %467 = vst.msk [vmem:[#allocation3 + $0x17] sm:$0x2] %vm268, %v439
        %468 = vst.msk [vmem:[#allocation3 + $0x2f] sm:$0x2] %vm268, %v443
        %469 = vst.msk [vmem:[#allocation3 + $0x47] sm:$0x2] %vm268, %v447
        %470 = vst.msk [vmem:[#allocation3 + $0xb] sm:$0x40] %vm273, %v437
        %471 = vst.msk [vmem:[#allocation3 + $0x23] sm:$0x40] %vm273, %v441
        %472 = vst.msk [vmem:[#allocation3 + $0x3b] sm:$0x40] %vm273, %v445
        %473 = vst.msk [vmem:[#allocation3 + $0x53] sm:$0x40] %vm273, %v449
        %v474 = vld [vmem:[#allocation3] sm:$0xff]
        %v475 = vld [vmem:[#allocation3 + $0x8] sm:$0xff]
        %v476 = vld [vmem:[#allocation3 + $0x10] sm:$0x3]
        %v477 = vld [vmem:[#allocation3 + $0x18] sm:$0xff]
        %v478 = vld [vmem:[#allocation3 + $0x20] sm:$0xff]
        %v479 = vld [vmem:[#allocation3 + $0x28] sm:$0x3]
        %v480 = vld [vmem:[#allocation3 + $0x30] sm:$0xff]
        %v481 = vld [vmem:[#allocation3 + $0x38] sm:$0xff]
        %v482 = vld [vmem:[#allocation3 + $0x40] sm:$0x3]
        %v483 = vld [vmem:[#allocation3 + $0x48] sm:$0xff]
        %v484 = vld [vmem:[#allocation3 + $0x50] sm:$0xff]
        %v485 = vld [vmem:[#allocation3 + $0x58] sm:$0x3]
        %498 = vrot.lane.b32.xlu0 %v474, 126
        %v499 = vpop.permute.xlu0 %498
        %500 = vrot.lane.b32.xlu0 %v475, 126
        %v501 = vpop.permute.xlu0 %500
        %502 = vrot.lane.b32.xlu0 %v476, 126
        %v503 = vpop.permute.xlu0 %502
        %504 = vrot.lane.b32.xlu0 %v477, 126
        %v505 = vpop.permute.xlu0 %504
        %506 = vrot.lane.b32.xlu0 %v478, 126
        %v507 = vpop.permute.xlu0 %506
        %508 = vrot.lane.b32.xlu0 %v479, 126
        %v509 = vpop.permute.xlu0 %508
        %510 = vrot.lane.b32.xlu0 %v480, 126
        %v511 = vpop.permute.xlu0 %510
        %512 = vrot.lane.b32.xlu0 %v481, 126
        %v513 = vpop.permute.xlu0 %512
        %514 = vrot.lane.b32.xlu0 %v482, 126
        %v515 = vpop.permute.xlu0 %514
        %516 = vrot.lane.b32.xlu0 %v483, 126
        %v517 = vpop.permute.xlu0 %516
        %518 = vrot.lane.b32.xlu0 %v484, 126
        %v519 = vpop.permute.xlu0 %518
        %520 = vrot.lane.b32.xlu0 %v485, 126
        %v521 = vpop.permute.xlu0 %520
        %534 = vst.msk [vmem:[#allocation3] sm:$0xff] %vm338, %v499
        %535 = vst.msk [vmem:[#allocation3 + $0x8] sm:$0xff] %vm338, %v501
        %536 = vst.msk [vmem:[#allocation3 + $0x10] sm:$0x3] %vm341, %v503
        %537 = vst.msk [vmem:[#allocation3 + $0x18] sm:$0xff] %vm338, %v505
        %538 = vst.msk [vmem:[#allocation3 + $0x20] sm:$0xff] %vm338, %v507
        %539 = vst.msk [vmem:[#allocation3 + $0x28] sm:$0x3] %vm341, %v509
        %540 = vst.msk [vmem:[#allocation3 + $0x30] sm:$0xff] %vm338, %v511
        %541 = vst.msk [vmem:[#allocation3 + $0x38] sm:$0xff] %vm338, %v513
        %542 = vst.msk [vmem:[#allocation3 + $0x40] sm:$0x3] %vm341, %v515
        %543 = vst.msk [vmem:[#allocation3 + $0x48] sm:$0xff] %vm338, %v517
        %544 = vst.msk [vmem:[#allocation3 + $0x50] sm:$0xff] %vm338, %v519
        %545 = vst.msk [vmem:[#allocation3 + $0x58] sm:$0x3] %vm341, %v521
        %v546 = vld [vmem:[#allocation3] sm:$0xff]
        %v547 = vld [vmem:[#allocation3 + $0x8] sm:$0xff]
        %v548 = vld [vmem:[#allocation3 + $0x10] sm:$0x3]
        %v549 = vld [vmem:[#allocation3 + $0x18] sm:$0xff]
        %v550 = vld [vmem:[#allocation3 + $0x20] sm:$0xff]
        %v551 = vld [vmem:[#allocation3 + $0x28] sm:$0x3]
        %v552 = vld [vmem:[#allocation3 + $0x30] sm:$0xff]
        %v553 = vld [vmem:[#allocation3 + $0x38] sm:$0xff]
        %v554 = vld [vmem:[#allocation3 + $0x40] sm:$0x3]
        %v555 = vld [vmem:[#allocation3 + $0x48] sm:$0xff]
        %v556 = vld [vmem:[#allocation3 + $0x50] sm:$0xff]
        %v557 = vld [vmem:[#allocation3 + $0x58] sm:$0x3]
        %570 = vrot.lane.b32.xlu0 %v546, 2
        %v571 = vpop.permute.xlu0 %570
        %572 = vrot.lane.b32.xlu0 %v547, 2
        %v573 = vpop.permute.xlu0 %572
        %574 = vrot.lane.b32.xlu0 %v548, 2
        %v575 = vpop.permute.xlu0 %574
        %576 = vrot.lane.b32.xlu0 %v549, 2
        %v577 = vpop.permute.xlu0 %576
        %578 = vrot.lane.b32.xlu0 %v550, 2
        %v579 = vpop.permute.xlu0 %578
        %580 = vrot.lane.b32.xlu0 %v551, 2
        %v581 = vpop.permute.xlu0 %580
        %582 = vrot.lane.b32.xlu0 %v552, 2
        %v583 = vpop.permute.xlu0 %582
        %584 = vrot.lane.b32.xlu0 %v553, 2
        %v585 = vpop.permute.xlu0 %584
        %586 = vrot.lane.b32.xlu0 %v554, 2
        %v587 = vpop.permute.xlu0 %586
        %588 = vrot.lane.b32.xlu0 %v555, 2
        %v589 = vpop.permute.xlu0 %588
        %590 = vrot.lane.b32.xlu0 %v556, 2
        %v591 = vpop.permute.xlu0 %590
        %592 = vrot.lane.b32.xlu0 %v557, 2
        %v593 = vpop.permute.xlu0 %592
        %606 = vst.msk [vmem:[#allocation3] sm:$0xff] %vm412, %v571
        %607 = vst.msk [vmem:[#allocation3 + $0x8] sm:$0xff] %vm412, %v573
        %608 = vst.msk [vmem:[#allocation3 + $0x10] sm:$0x3] %vm415, %v575
        %609 = vst.msk [vmem:[#allocation3 + $0x18] sm:$0xff] %vm412, %v577
        %610 = vst.msk [vmem:[#allocation3 + $0x20] sm:$0xff] %vm412, %v579
        %611 = vst.msk [vmem:[#allocation3 + $0x28] sm:$0x3] %vm415, %v581
        %612 = vst.msk [vmem:[#allocation3 + $0x30] sm:$0xff] %vm412, %v583
        %613 = vst.msk [vmem:[#allocation3 + $0x38] sm:$0xff] %vm412, %v585
        %614 = vst.msk [vmem:[#allocation3 + $0x40] sm:$0x3] %vm415, %v587
        %615 = vst.msk [vmem:[#allocation3 + $0x48] sm:$0xff] %vm412, %v589
        %616 = vst.msk [vmem:[#allocation3 + $0x50] sm:$0xff] %vm412, %v591
        %617 = vst.msk [vmem:[#allocation3 + $0x58] sm:$0x3] %vm415, %v593
        %v618 = vld [vmem:[#allocation2] sm:$0xff]
        %v619 = vld [vmem:[#allocation2 + $0x8] sm:$0xff]
        %v620 = vld [vmem:[#allocation2 + $0x10] sm:$0x3]
        %v621 = vld [vmem:[#allocation2 + $0x18] sm:$0xff]
        %v622 = vld [vmem:[#allocation2 + $0x20] sm:$0xff]
        %v623 = vld [vmem:[#allocation2 + $0x28] sm:$0x3]
        %v624 = vld [vmem:[#allocation2 + $0x30] sm:$0xff]
        %v625 = vld [vmem:[#allocation2 + $0x38] sm:$0xff]
        %v626 = vld [vmem:[#allocation2 + $0x40] sm:$0x3]
        %v627 = vld [vmem:[#allocation2 + $0x48] sm:$0xff]
        %v628 = vld [vmem:[#allocation2 + $0x50] sm:$0xff]
        %v629 = vld [vmem:[#allocation2 + $0x58] sm:$0x3]
        %v630 = vld [vmem:[#allocation3] sm:$0xff]
        %v631 = vld [vmem:[#allocation3 + $0x8] sm:$0xff]
        %v632 = vld [vmem:[#allocation3 + $0x10] sm:$0x3]
        %v633 = vld [vmem:[#allocation3 + $0x18] sm:$0xff]
        %v634 = vld [vmem:[#allocation3 + $0x20] sm:$0xff]
        %v635 = vld [vmem:[#allocation3 + $0x28] sm:$0x3]
        %v636 = vld [vmem:[#allocation3 + $0x30] sm:$0xff]
        %v637 = vld [vmem:[#allocation3 + $0x38] sm:$0xff]
        %v638 = vld [vmem:[#allocation3 + $0x40] sm:$0x3]
        %v639 = vld [vmem:[#allocation3 + $0x48] sm:$0xff]
        %v640 = vld [vmem:[#allocation3 + $0x50] sm:$0xff]
        %v641 = vld [vmem:[#allocation3 + $0x58] sm:$0x3]
        %v642 = vmul.f32 %v618, %v618
        %v643 = vmul.f32 %v619, %v619
        %v644 = vmul.f32 %v620, %v620
        %v645 = vmul.f32 %v621, %v621
        %v646 = vmul.f32 %v622, %v622
        %v647 = vmul.f32 %v623, %v623
        %v648 = vmul.f32 %v624, %v624
        %v649 = vmul.f32 %v625, %v625
        %v650 = vmul.f32 %v626, %v626
        %v651 = vmul.f32 %v627, %v627
        %v652 = vmul.f32 %v628, %v628
        %v653 = vmul.f32 %v629, %v629
        %v654 = vmul.f32 %v630, %v630
        %v655 = vmul.f32 %v631, %v631
        %v656 = vmul.f32 %v632, %v632
        %v657 = vmul.f32 %v633, %v633
        %v658 = vmul.f32 %v634, %v634
        %v659 = vmul.f32 %v635, %v635
        %v660 = vmul.f32 %v636, %v636
        %v661 = vmul.f32 %v637, %v637
        %v662 = vmul.f32 %v638, %v638
        %v663 = vmul.f32 %v639, %v639
        %v664 = vmul.f32 %v640, %v640
        %v665 = vmul.f32 %v641, %v641
        %v666 = vmul.f32 %v618, %v630
        %v667 = vmul.f32 %v619, %v631
        %v668 = vmul.f32 %v620, %v632
        %v669 = vmul.f32 %v621, %v633
        %v670 = vmul.f32 %v622, %v634
        %v671 = vmul.f32 %v623, %v635
        %v672 = vmul.f32 %v624, %v636
        %v673 = vmul.f32 %v625, %v637
        %v674 = vmul.f32 %v626, %v638
        %v675 = vmul.f32 %v627, %v639
        %v676 = vmul.f32 %v628, %v640
        %v677 = vmul.f32 %v629, %v641
        %vm690 = vcmask 1046528
        %v691 = vrot.slane %v618, 1
        %v692 = vrot.slane %v619, 1
        %v693 = vsel %vm690, %v691, %v692
        %v694 = vrot.slane %v620, 1
        %v695 = vsel %vm690, %v692, %v694
        %v696 = vrot.slane %v621, 1
        %v697 = vrot.slane %v622, 1
        %v698 = vsel %vm690, %v696, %v697
        %v699 = vrot.slane %v623, 1
        %v700 = vsel %vm690, %v697, %v699
        %v701 = vrot.slane %v624, 1
        %v702 = vrot.slane %v625, 1
        %v703 = vsel %vm690, %v701, %v702
        %v704 = vrot.slane %v626, 1
        %v705 = vsel %vm690, %v702, %v704
        %v706 = vrot.slane %v627, 1
        %v707 = vrot.slane %v628, 1
        %v708 = vsel %vm690, %v706, %v707
        %v709 = vrot.slane %v629, 1
        %v710 = vsel %vm690, %v707, %v709
        %v719 = vadd.f32 %v618, %v693
        %v720 = vadd.f32 %v619, %v695
        %v721 = vadd.f32 %v621, %v698
        %v722 = vadd.f32 %v622, %v700
        %v723 = vadd.f32 %v624, %v703
        %v724 = vadd.f32 %v625, %v705
        %v725 = vadd.f32 %v627, %v708
        %v726 = vadd.f32 %v628, %v710
        %vm727 = vcmask 1045504
        %v728 = vrot.slane %v618, 2
        %v729 = vrot.slane %v619, 2
        %v730 = vsel %vm727, %v728, %v729
        %v731 = vrot.slane %v620, 2
        %v732 = vsel %vm727, %v729, %v731
        %v733 = vrot.slane %v621, 2
        %v734 = vrot.slane %v622, 2
        %v735 = vsel %vm727, %v733, %v734
        %v736 = vrot.slane %v623, 2
        %v737 = vsel %vm727, %v734, %v736
        %v738 = vrot.slane %v624, 2
        %v739 = vrot.slane %v625, 2
        %v740 = vsel %vm727, %v738, %v739
        %v741 = vrot.slane %v626, 2
        %v742 = vsel %vm727, %v739, %v741
        %v743 = vrot.slane %v627, 2
        %v744 = vrot.slane %v628, 2
        %v745 = vsel %vm727, %v743, %v744
        %v746 = vrot.slane %v629, 2
        %v747 = vsel %vm727, %v744, %v746
        %v756 = vadd.f32 %v719, %v730
        %v757 = vadd.f32 %v720, %v732
        %v758 = vadd.f32 %v721, %v735
        %v759 = vadd.f32 %v722, %v737
        %v760 = vadd.f32 %v723, %v740
        %v761 = vadd.f32 %v724, %v742
        %v762 = vadd.f32 %v725, %v745
        %v763 = vadd.f32 %v726, %v747
        %772 = vrot.lane.b32.xlu0 %v756, 127
        %v773 = vpop.permute.xlu0 %772
        %774 = vrot.lane.b32.xlu0 %v757, 127
        %v775 = vpop.permute.xlu0 %774
        %776 = vrot.lane.b32.xlu0 %v758, 127
        %v777 = vpop.permute.xlu0 %776
        %778 = vrot.lane.b32.xlu0 %v759, 127
        %v779 = vpop.permute.xlu0 %778
        %780 = vrot.lane.b32.xlu0 %v760, 127
        %v781 = vpop.permute.xlu0 %780
        %782 = vrot.lane.b32.xlu0 %v761, 127
        %v783 = vpop.permute.xlu0 %782
        %784 = vrot.lane.b32.xlu0 %v762, 127
        %v785 = vpop.permute.xlu0 %784
        %786 = vrot.lane.b32.xlu0 %v763, 127
        %v787 = vpop.permute.xlu0 %786
        %v796 = vadd.f32 %v756, %v773
        %v797 = vadd.f32 %v757, %v775
        %v798 = vadd.f32 %v758, %v777
        %v799 = vadd.f32 %v759, %v779
        %v800 = vadd.f32 %v760, %v781
        %v801 = vadd.f32 %v761, %v783
        %v802 = vadd.f32 %v762, %v785
        %v803 = vadd.f32 %v763, %v787
        %804 = vrot.lane.b32.xlu0 %v756, 126
        %v805 = vpop.permute.xlu0 %804
        %806 = vrot.lane.b32.xlu0 %v757, 126
        %v807 = vpop.permute.xlu0 %806
        %808 = vrot.lane.b32.xlu0 %v758, 126
        %v809 = vpop.permute.xlu0 %808
        %810 = vrot.lane.b32.xlu0 %v759, 126
        %v811 = vpop.permute.xlu0 %810
        %812 = vrot.lane.b32.xlu0 %v760, 126
        %v813 = vpop.permute.xlu0 %812
        %814 = vrot.lane.b32.xlu0 %v761, 126
        %v815 = vpop.permute.xlu0 %814
        %816 = vrot.lane.b32.xlu0 %v762, 126
        %v817 = vpop.permute.xlu0 %816
        %818 = vrot.lane.b32.xlu0 %v763, 126
        %v819 = vpop.permute.xlu0 %818
        %v828 = vadd.f32 %v796, %v805
        %v829 = vadd.f32 %v797, %v807
        %v830 = vadd.f32 %v798, %v809
        %v831 = vadd.f32 %v799, %v811
        %v832 = vadd.f32 %v800, %v813
        %v833 = vadd.f32 %v801, %v815
        %v834 = vadd.f32 %v802, %v817
        %v835 = vadd.f32 %v803, %v819
        %v836 = vmul.f32 %v828, 0.11111111
        %v837 = vmul.f32 %v829, 0.11111111
        %v838 = vmul.f32 %v830, 0.11111111
        %v839 = vmul.f32 %v831, 0.11111111
        %v840 = vmul.f32 %v832, 0.11111111
        %v841 = vmul.f32 %v833, 0.11111111
        %v842 = vmul.f32 %v834, 0.11111111
        %v843 = vmul.f32 %v835, 0.11111111
        %v856 = vrot.slane %v630, 1
        %v857 = vrot.slane %v631, 1
        %v858 = vsel %vm690, %v856, %v857
        %v859 = vrot.slane %v632, 1
        %v860 = vsel %vm690, %v857, %v859
        %v861 = vrot.slane %v633, 1
        %v862 = vrot.slane %v634, 1
        %v863 = vsel %vm690, %v861, %v862
        %v864 = vrot.slane %v635, 1
        %v865 = vsel %vm690, %v862, %v864
        %v866 = vrot.slane %v636, 1
        %v867 = vrot.slane %v637, 1
        %v868 = vsel %vm690, %v866, %v867
        %v869 = vrot.slane %v638, 1
        %v870 = vsel %vm690, %v867, %v869
        %v871 = vrot.slane %v639, 1
        %v872 = vrot.slane %v640, 1
        %v873 = vsel %vm690, %v871, %v872
        %v874 = vrot.slane %v641, 1
        %v875 = vsel %vm690, %v872, %v874
        %v884 = vadd.f32 %v630, %v858
        %v885 = vadd.f32 %v631, %v860
        %v886 = vadd.f32 %v633, %v863
        %v887 = vadd.f32 %v634, %v865
        %v888 = vadd.f32 %v636, %v868
        %v889 = vadd.f32 %v637, %v870
        %v890 = vadd.f32 %v639, %v873
        %v891 = vadd.f32 %v640, %v875
        %v892 = vrot.slane %v630, 2
        %v893 = vrot.slane %v631, 2
        %v894 = vsel %vm727, %v892, %v893
        %v895 = vrot.slane %v632, 2
        %v896 = vsel %vm727, %v893, %v895
        %v897 = vrot.slane %v633, 2
        %v898 = vrot.slane %v634, 2
        %v899 = vsel %vm727, %v897, %v898
        %v900 = vrot.slane %v635, 2
        %v901 = vsel %vm727, %v898, %v900
        %v902 = vrot.slane %v636, 2
        %v903 = vrot.slane %v637, 2
        %v904 = vsel %vm727, %v902, %v903
        %v905 = vrot.slane %v638, 2
        %v906 = vsel %vm727, %v903, %v905
        %v907 = vrot.slane %v639, 2
        %v908 = vrot.slane %v640, 2
        %v909 = vsel %vm727, %v907, %v908
        %v910 = vrot.slane %v641, 2
        %v911 = vsel %vm727, %v908, %v910
        %v920 = vadd.f32 %v884, %v894
        %v921 = vadd.f32 %v885, %v896
        %v922 = vadd.f32 %v886, %v899
        %v923 = vadd.f32 %v887, %v901
        %v924 = vadd.f32 %v888, %v904
        %v925 = vadd.f32 %v889, %v906
        %v926 = vadd.f32 %v890, %v909
        %v927 = vadd.f32 %v891, %v911
        %936 = vrot.lane.b32.xlu0 %v920, 127
        %v937 = vpop.permute.xlu0 %936
        %938 = vrot.lane.b32.xlu0 %v921, 127
        %v939 = vpop.permute.xlu0 %938
        %940 = vrot.lane.b32.xlu0 %v922, 127
        %v941 = vpop.permute.xlu0 %940
        %942 = vrot.lane.b32.xlu0 %v923, 127
        %v943 = vpop.permute.xlu0 %942
        %944 = vrot.lane.b32.xlu0 %v924, 127
        %v945 = vpop.permute.xlu0 %944
        %946 = vrot.lane.b32.xlu0 %v925, 127
        %v947 = vpop.permute.xlu0 %946
        %948 = vrot.lane.b32.xlu0 %v926, 127
        %v949 = vpop.permute.xlu0 %948
        %950 = vrot.lane.b32.xlu0 %v927, 127
        %v951 = vpop.permute.xlu0 %950
        %v960 = vadd.f32 %v920, %v937
        %v961 = vadd.f32 %v921, %v939
        %v962 = vadd.f32 %v922, %v941
        %v963 = vadd.f32 %v923, %v943
        %v964 = vadd.f32 %v924, %v945
        %v965 = vadd.f32 %v925, %v947
        %v966 = vadd.f32 %v926, %v949
        %v967 = vadd.f32 %v927, %v951
        %968 = vrot.lane.b32.xlu0 %v920, 126
        %v969 = vpop.permute.xlu0 %968
        %970 = vrot.lane.b32.xlu0 %v921, 126
        %v971 = vpop.permute.xlu0 %970
        %972 = vrot.lane.b32.xlu0 %v922, 126
        %v973 = vpop.permute.xlu0 %972
        %974 = vrot.lane.b32.xlu0 %v923, 126
        %v975 = vpop.permute.xlu0 %974
        %976 = vrot.lane.b32.xlu0 %v924, 126
        %v977 = vpop.permute.xlu0 %976
        %978 = vrot.lane.b32.xlu0 %v925, 126
        %v979 = vpop.permute.xlu0 %978
        %980 = vrot.lane.b32.xlu0 %v926, 126
        %v981 = vpop.permute.xlu0 %980
        %982 = vrot.lane.b32.xlu0 %v927, 126
        %v983 = vpop.permute.xlu0 %982
        %v992 = vadd.f32 %v960, %v969
        %v993 = vadd.f32 %v961, %v971
        %v994 = vadd.f32 %v962, %v973
        %v995 = vadd.f32 %v963, %v975
        %v996 = vadd.f32 %v964, %v977
        %v997 = vadd.f32 %v965, %v979
        %v998 = vadd.f32 %v966, %v981
        %v999 = vadd.f32 %v967, %v983
        %v1000 = vmul.f32 %v992, 0.11111111
        %v1001 = vmul.f32 %v993, 0.11111111
        %v1002 = vmul.f32 %v994, 0.11111111
        %v1003 = vmul.f32 %v995, 0.11111111
        %v1004 = vmul.f32 %v996, 0.11111111
        %v1005 = vmul.f32 %v997, 0.11111111
        %v1006 = vmul.f32 %v998, 0.11111111
        %v1007 = vmul.f32 %v999, 0.11111111
        %v1020 = vrot.slane %v642, 1
        %v1021 = vrot.slane %v643, 1
        %v1022 = vsel %vm690, %v1020, %v1021
        %v1023 = vrot.slane %v644, 1
        %v1024 = vsel %vm690, %v1021, %v1023
        %v1025 = vrot.slane %v645, 1
        %v1026 = vrot.slane %v646, 1
        %v1027 = vsel %vm690, %v1025, %v1026
        %v1028 = vrot.slane %v647, 1
        %v1029 = vsel %vm690, %v1026, %v1028
        %v1030 = vrot.slane %v648, 1
        %v1031 = vrot.slane %v649, 1
        %v1032 = vsel %vm690, %v1030, %v1031
        %v1033 = vrot.slane %v650, 1
        %v1034 = vsel %vm690, %v1031, %v1033
        %v1035 = vrot.slane %v651, 1
        %v1036 = vrot.slane %v652, 1
        %v1037 = vsel %vm690, %v1035, %v1036
        %v1038 = vrot.slane %v653, 1
        %v1039 = vsel %vm690, %v1036, %v1038
        %v1048 = vadd.f32 %v642, %v1022
        %v1049 = vadd.f32 %v643, %v1024
        %v1050 = vadd.f32 %v645, %v1027
        %v1051 = vadd.f32 %v646, %v1029
        %v1052 = vadd.f32 %v648, %v1032
        %v1053 = vadd.f32 %v649, %v1034
        %v1054 = vadd.f32 %v651, %v1037
        %v1055 = vadd.f32 %v652, %v1039
        %v1056 = vrot.slane %v642, 2
        %v1057 = vrot.slane %v643, 2
        %v1058 = vsel %vm727, %v1056, %v1057
        %v1059 = vrot.slane %v644, 2
        %v1060 = vsel %vm727, %v1057, %v1059
        %v1061 = vrot.slane %v645, 2
        %v1062 = vrot.slane %v646, 2
        %v1063 = vsel %vm727, %v1061, %v1062
        %v1064 = vrot.slane %v647, 2
        %v1065 = vsel %vm727, %v1062, %v1064
        %v1066 = vrot.slane %v648, 2
        %v1067 = vrot.slane %v649, 2
        %v1068 = vsel %vm727, %v1066, %v1067
        %v1069 = vrot.slane %v650, 2
        %v1070 = vsel %vm727, %v1067, %v1069
        %v1071 = vrot.slane %v651, 2
        %v1072 = vrot.slane %v652, 2
        %v1073 = vsel %vm727, %v1071, %v1072
        %v1074 = vrot.slane %v653, 2
        %v1075 = vsel %vm727, %v1072, %v1074
        %v1084 = vadd.f32 %v1048, %v1058
        %v1085 = vadd.f32 %v1049, %v1060
        %v1086 = vadd.f32 %v1050, %v1063
        %v1087 = vadd.f32 %v1051, %v1065
        %v1088 = vadd.f32 %v1052, %v1068
        %v1089 = vadd.f32 %v1053, %v1070
        %v1090 = vadd.f32 %v1054, %v1073
        %v1091 = vadd.f32 %v1055, %v1075
        %1100 = vrot.lane.b32.xlu0 %v1084, 127
        %v1101 = vpop.permute.xlu0 %1100
        %1102 = vrot.lane.b32.xlu0 %v1085, 127
        %v1103 = vpop.permute.xlu0 %1102
        %1104 = vrot.lane.b32.xlu0 %v1086, 127
        %v1105 = vpop.permute.xlu0 %1104
        %1106 = vrot.lane.b32.xlu0 %v1087, 127
        %v1107 = vpop.permute.xlu0 %1106
        %1108 = vrot.lane.b32.xlu0 %v1088, 127
        %v1109 = vpop.permute.xlu0 %1108
        %1110 = vrot.lane.b32.xlu0 %v1089, 127
        %v1111 = vpop.permute.xlu0 %1110
        %1112 = vrot.lane.b32.xlu0 %v1090, 127
        %v1113 = vpop.permute.xlu0 %1112
        %1114 = vrot.lane.b32.xlu0 %v1091, 127
        %v1115 = vpop.permute.xlu0 %1114
        %v1124 = vadd.f32 %v1084, %v1101
        %v1125 = vadd.f32 %v1085, %v1103
        %v1126 = vadd.f32 %v1086, %v1105
        %v1127 = vadd.f32 %v1087, %v1107
        %v1128 = vadd.f32 %v1088, %v1109
        %v1129 = vadd.f32 %v1089, %v1111
        %v1130 = vadd.f32 %v1090, %v1113
        %v1131 = vadd.f32 %v1091, %v1115
        %1132 = vrot.lane.b32.xlu0 %v1084, 126
        %v1133 = vpop.permute.xlu0 %1132
        %1134 = vrot.lane.b32.xlu0 %v1085, 126
        %v1135 = vpop.permute.xlu0 %1134
        %1136 = vrot.lane.b32.xlu0 %v1086, 126
        %v1137 = vpop.permute.xlu0 %1136
        %1138 = vrot.lane.b32.xlu0 %v1087, 126
        %v1139 = vpop.permute.xlu0 %1138
        %1140 = vrot.lane.b32.xlu0 %v1088, 126
        %v1141 = vpop.permute.xlu0 %1140
        %1142 = vrot.lane.b32.xlu0 %v1089, 126
        %v1143 = vpop.permute.xlu0 %1142
        %1144 = vrot.lane.b32.xlu0 %v1090, 126
        %v1145 = vpop.permute.xlu0 %1144
        %1146 = vrot.lane.b32.xlu0 %v1091, 126
        %v1147 = vpop.permute.xlu0 %1146
        %v1156 = vadd.f32 %v1124, %v1133
        %v1157 = vadd.f32 %v1125, %v1135
        %v1158 = vadd.f32 %v1126, %v1137
        %v1159 = vadd.f32 %v1127, %v1139
        %v1160 = vadd.f32 %v1128, %v1141
        %v1161 = vadd.f32 %v1129, %v1143
        %v1162 = vadd.f32 %v1130, %v1145
        %v1163 = vadd.f32 %v1131, %v1147
        %v1164 = vmul.f32 %v1156, 0.11111111
        %v1165 = vmul.f32 %v1157, 0.11111111
        %v1166 = vmul.f32 %v1158, 0.11111111
        %v1167 = vmul.f32 %v1159, 0.11111111
        %v1168 = vmul.f32 %v1160, 0.11111111
        %v1169 = vmul.f32 %v1161, 0.11111111
        %v1170 = vmul.f32 %v1162, 0.11111111
        %v1171 = vmul.f32 %v1163, 0.11111111
        %v1184 = vrot.slane %v654, 1
        %v1185 = vrot.slane %v655, 1
        %v1186 = vsel %vm690, %v1184, %v1185
        %v1187 = vrot.slane %v656, 1
        %v1188 = vsel %vm690, %v1185, %v1187
        %v1189 = vrot.slane %v657, 1
        %v1190 = vrot.slane %v658, 1
        %v1191 = vsel %vm690, %v1189, %v1190
        %v1192 = vrot.slane %v659, 1
        %v1193 = vsel %vm690, %v1190, %v1192
        %v1194 = vrot.slane %v660, 1
        %v1195 = vrot.slane %v661, 1
        %v1196 = vsel %vm690, %v1194, %v1195
        %v1197 = vrot.slane %v662, 1
        %v1198 = vsel %vm690, %v1195, %v1197
        %v1199 = vrot.slane %v663, 1
        %v1200 = vrot.slane %v664, 1
        %v1201 = vsel %vm690, %v1199, %v1200
        %v1202 = vrot.slane %v665, 1
        %v1203 = vsel %vm690, %v1200, %v1202
        %v1212 = vadd.f32 %v654, %v1186
        %v1213 = vadd.f32 %v655, %v1188
        %v1214 = vadd.f32 %v657, %v1191
        %v1215 = vadd.f32 %v658, %v1193
        %v1216 = vadd.f32 %v660, %v1196
        %v1217 = vadd.f32 %v661, %v1198
        %v1218 = vadd.f32 %v663, %v1201
        %v1219 = vadd.f32 %v664, %v1203
        %v1220 = vrot.slane %v654, 2
        %v1221 = vrot.slane %v655, 2
        %v1222 = vsel %vm727, %v1220, %v1221
        %v1223 = vrot.slane %v656, 2
        %v1224 = vsel %vm727, %v1221, %v1223
        %v1225 = vrot.slane %v657, 2
        %v1226 = vrot.slane %v658, 2
        %v1227 = vsel %vm727, %v1225, %v1226
        %v1228 = vrot.slane %v659, 2
        %v1229 = vsel %vm727, %v1226, %v1228
        %v1230 = vrot.slane %v660, 2
        %v1231 = vrot.slane %v661, 2
        %v1232 = vsel %vm727, %v1230, %v1231
        %v1233 = vrot.slane %v662, 2
        %v1234 = vsel %vm727, %v1231, %v1233
        %v1235 = vrot.slane %v663, 2
        %v1236 = vrot.slane %v664, 2
        %v1237 = vsel %vm727, %v1235, %v1236
        %v1238 = vrot.slane %v665, 2
        %v1239 = vsel %vm727, %v1236, %v1238
        %v1248 = vadd.f32 %v1212, %v1222
        %v1249 = vadd.f32 %v1213, %v1224
        %v1250 = vadd.f32 %v1214, %v1227
        %v1251 = vadd.f32 %v1215, %v1229
        %v1252 = vadd.f32 %v1216, %v1232
        %v1253 = vadd.f32 %v1217, %v1234
        %v1254 = vadd.f32 %v1218, %v1237
        %v1255 = vadd.f32 %v1219, %v1239
        %1264 = vrot.lane.b32.xlu0 %v1248, 127
        %v1265 = vpop.permute.xlu0 %1264
        %1266 = vrot.lane.b32.xlu0 %v1249, 127
        %v1267 = vpop.permute.xlu0 %1266
        %1268 = vrot.lane.b32.xlu0 %v1250, 127
        %v1269 = vpop.permute.xlu0 %1268
        %1270 = vrot.lane.b32.xlu0 %v1251, 127
        %v1271 = vpop.permute.xlu0 %1270
        %1272 = vrot.lane.b32.xlu0 %v1252, 127
        %v1273 = vpop.permute.xlu0 %1272
        %1274 = vrot.lane.b32.xlu0 %v1253, 127
        %v1275 = vpop.permute.xlu0 %1274
        %1276 = vrot.lane.b32.xlu0 %v1254, 127
        %v1277 = vpop.permute.xlu0 %1276
        %1278 = vrot.lane.b32.xlu0 %v1255, 127
        %v1279 = vpop.permute.xlu0 %1278
        %v1288 = vadd.f32 %v1248, %v1265
        %v1289 = vadd.f32 %v1249, %v1267
        %v1290 = vadd.f32 %v1250, %v1269
        %v1291 = vadd.f32 %v1251, %v1271
        %v1292 = vadd.f32 %v1252, %v1273
        %v1293 = vadd.f32 %v1253, %v1275
        %v1294 = vadd.f32 %v1254, %v1277
        %v1295 = vadd.f32 %v1255, %v1279
        %1296 = vrot.lane.b32.xlu0 %v1248, 126
        %v1297 = vpop.permute.xlu0 %1296
        %1298 = vrot.lane.b32.xlu0 %v1249, 126
        %v1299 = vpop.permute.xlu0 %1298
        %1300 = vrot.lane.b32.xlu0 %v1250, 126
        %v1301 = vpop.permute.xlu0 %1300
        %1302 = vrot.lane.b32.xlu0 %v1251, 126
        %v1303 = vpop.permute.xlu0 %1302
        %1304 = vrot.lane.b32.xlu0 %v1252, 126
        %v1305 = vpop.permute.xlu0 %1304
        %1306 = vrot.lane.b32.xlu0 %v1253, 126
        %v1307 = vpop.permute.xlu0 %1306
        %1308 = vrot.lane.b32.xlu0 %v1254, 126
        %v1309 = vpop.permute.xlu0 %1308
        %1310 = vrot.lane.b32.xlu0 %v1255, 126
        %v1311 = vpop.permute.xlu0 %1310
        %v1320 = vadd.f32 %v1288, %v1297
        %v1321 = vadd.f32 %v1289, %v1299
        %v1322 = vadd.f32 %v1290, %v1301
        %v1323 = vadd.f32 %v1291, %v1303
        %v1324 = vadd.f32 %v1292, %v1305
        %v1325 = vadd.f32 %v1293, %v1307
        %v1326 = vadd.f32 %v1294, %v1309
        %v1327 = vadd.f32 %v1295, %v1311
        %v1328 = vmul.f32 %v1320, 0.11111111
        %v1329 = vmul.f32 %v1321, 0.11111111
        %v1330 = vmul.f32 %v1322, 0.11111111
        %v1331 = vmul.f32 %v1323, 0.11111111
        %v1332 = vmul.f32 %v1324, 0.11111111
        %v1333 = vmul.f32 %v1325, 0.11111111
        %v1334 = vmul.f32 %v1326, 0.11111111
        %v1335 = vmul.f32 %v1327, 0.11111111
        %v1348 = vrot.slane %v666, 1
        %v1349 = vrot.slane %v667, 1
        %v1350 = vsel %vm690, %v1348, %v1349
        %v1351 = vrot.slane %v668, 1
        %v1352 = vsel %vm690, %v1349, %v1351
        %v1353 = vrot.slane %v669, 1
        %v1354 = vrot.slane %v670, 1
        %v1355 = vsel %vm690, %v1353, %v1354
        %v1356 = vrot.slane %v671, 1
        %v1357 = vsel %vm690, %v1354, %v1356
        %v1358 = vrot.slane %v672, 1
        %v1359 = vrot.slane %v673, 1
        %v1360 = vsel %vm690, %v1358, %v1359
        %v1361 = vrot.slane %v674, 1
        %v1362 = vsel %vm690, %v1359, %v1361
        %v1363 = vrot.slane %v675, 1
        %v1364 = vrot.slane %v676, 1
        %v1365 = vsel %vm690, %v1363, %v1364
        %v1366 = vrot.slane %v677, 1
        %v1367 = vsel %vm690, %v1364, %v1366
        %v1376 = vadd.f32 %v666, %v1350
        %v1377 = vadd.f32 %v667, %v1352
        %v1378 = vadd.f32 %v669, %v1355
        %v1379 = vadd.f32 %v670, %v1357
        %v1380 = vadd.f32 %v672, %v1360
        %v1381 = vadd.f32 %v673, %v1362
        %v1382 = vadd.f32 %v675, %v1365
        %v1383 = vadd.f32 %v676, %v1367
        %v1384 = vrot.slane %v666, 2
        %v1385 = vrot.slane %v667, 2
        %v1386 = vsel %vm727, %v1384, %v1385
        %v1387 = vrot.slane %v668, 2
        %v1388 = vsel %vm727, %v1385, %v1387
        %v1389 = vrot.slane %v669, 2
        %v1390 = vrot.slane %v670, 2
        %v1391 = vsel %vm727, %v1389, %v1390
        %v1392 = vrot.slane %v671, 2
        %v1393 = vsel %vm727, %v1390, %v1392
        %v1394 = vrot.slane %v672, 2
        %v1395 = vrot.slane %v673, 2
        %v1396 = vsel %vm727, %v1394, %v1395
        %v1397 = vrot.slane %v674, 2
        %v1398 = vsel %vm727, %v1395, %v1397
        %v1399 = vrot.slane %v675, 2
        %v1400 = vrot.slane %v676, 2
        %v1401 = vsel %vm727, %v1399, %v1400
        %v1402 = vrot.slane %v677, 2
        %v1403 = vsel %vm727, %v1400, %v1402
        %v1412 = vadd.f32 %v1376, %v1386
        %v1413 = vadd.f32 %v1377, %v1388
        %v1414 = vadd.f32 %v1378, %v1391
        %v1415 = vadd.f32 %v1379, %v1393
        %v1416 = vadd.f32 %v1380, %v1396
        %v1417 = vadd.f32 %v1381, %v1398
        %v1418 = vadd.f32 %v1382, %v1401
        %v1419 = vadd.f32 %v1383, %v1403
        %1428 = vrot.lane.b32.xlu0 %v1412, 127
        %v1429 = vpop.permute.xlu0 %1428
        %1430 = vrot.lane.b32.xlu0 %v1413, 127
        %v1431 = vpop.permute.xlu0 %1430
        %1432 = vrot.lane.b32.xlu0 %v1414, 127
        %v1433 = vpop.permute.xlu0 %1432
        %1434 = vrot.lane.b32.xlu0 %v1415, 127
        %v1435 = vpop.permute.xlu0 %1434
        %1436 = vrot.lane.b32.xlu0 %v1416, 127
        %v1437 = vpop.permute.xlu0 %1436
        %1438 = vrot.lane.b32.xlu0 %v1417, 127
        %v1439 = vpop.permute.xlu0 %1438
        %1440 = vrot.lane.b32.xlu0 %v1418, 127
        %v1441 = vpop.permute.xlu0 %1440
        %1442 = vrot.lane.b32.xlu0 %v1419, 127
        %v1443 = vpop.permute.xlu0 %1442
        %v1452 = vadd.f32 %v1412, %v1429
        %v1453 = vadd.f32 %v1413, %v1431
        %v1454 = vadd.f32 %v1414, %v1433
        %v1455 = vadd.f32 %v1415, %v1435
        %v1456 = vadd.f32 %v1416, %v1437
        %v1457 = vadd.f32 %v1417, %v1439
        %v1458 = vadd.f32 %v1418, %v1441
        %v1459 = vadd.f32 %v1419, %v1443
        %1460 = vrot.lane.b32.xlu0 %v1412, 126
        %v1461 = vpop.permute.xlu0 %1460
        %1462 = vrot.lane.b32.xlu0 %v1413, 126
        %v1463 = vpop.permute.xlu0 %1462
        %1464 = vrot.lane.b32.xlu0 %v1414, 126
        %v1465 = vpop.permute.xlu0 %1464
        %1466 = vrot.lane.b32.xlu0 %v1415, 126
        %v1467 = vpop.permute.xlu0 %1466
        %1468 = vrot.lane.b32.xlu0 %v1416, 126
        %v1469 = vpop.permute.xlu0 %1468
        %1470 = vrot.lane.b32.xlu0 %v1417, 126
        %v1471 = vpop.permute.xlu0 %1470
        %1472 = vrot.lane.b32.xlu0 %v1418, 126
        %v1473 = vpop.permute.xlu0 %1472
        %1474 = vrot.lane.b32.xlu0 %v1419, 126
        %v1475 = vpop.permute.xlu0 %1474
        %v1484 = vadd.f32 %v1452, %v1461
        %v1485 = vadd.f32 %v1453, %v1463
        %v1486 = vadd.f32 %v1454, %v1465
        %v1487 = vadd.f32 %v1455, %v1467
        %v1488 = vadd.f32 %v1456, %v1469
        %v1489 = vadd.f32 %v1457, %v1471
        %v1490 = vadd.f32 %v1458, %v1473
        %v1491 = vadd.f32 %v1459, %v1475
        %v1492 = vmul.f32 %v1484, 0.11111111
        %v1493 = vmul.f32 %v1485, 0.11111111
        %v1494 = vmul.f32 %v1486, 0.11111111
        %v1495 = vmul.f32 %v1487, 0.11111111
        %v1496 = vmul.f32 %v1488, 0.11111111
        %v1497 = vmul.f32 %v1489, 0.11111111
        %v1498 = vmul.f32 %v1490, 0.11111111
        %v1499 = vmul.f32 %v1491, 0.11111111
        %v1500 = vmul.f32 %v836, %v836
        %v1501 = vmul.f32 %v837, %v837
        %v1502 = vmul.f32 %v838, %v838
        %v1503 = vmul.f32 %v839, %v839
        %v1504 = vmul.f32 %v840, %v840
        %v1505 = vmul.f32 %v841, %v841
        %v1506 = vmul.f32 %v842, %v842
        %v1507 = vmul.f32 %v843, %v843
        %v1508 = vsub.f32 %v1164, %v1500
        %v1509 = vsub.f32 %v1165, %v1501
        %v1510 = vsub.f32 %v1166, %v1502
        %v1511 = vsub.f32 %v1167, %v1503
        %v1512 = vsub.f32 %v1168, %v1504
        %v1513 = vsub.f32 %v1169, %v1505
        %v1514 = vsub.f32 %v1170, %v1506
        %v1515 = vsub.f32 %v1171, %v1507
        %v1516 = vmul.f32 %v1000, %v1000
        %v1517 = vmul.f32 %v1001, %v1001
        %v1518 = vmul.f32 %v1002, %v1002
        %v1519 = vmul.f32 %v1003, %v1003
        %v1520 = vmul.f32 %v1004, %v1004
        %v1521 = vmul.f32 %v1005, %v1005
        %v1522 = vmul.f32 %v1006, %v1006
        %v1523 = vmul.f32 %v1007, %v1007
        %v1524 = vsub.f32 %v1328, %v1516
        %v1525 = vsub.f32 %v1329, %v1517
        %v1526 = vsub.f32 %v1330, %v1518
        %v1527 = vsub.f32 %v1331, %v1519
        %v1528 = vsub.f32 %v1332, %v1520
        %v1529 = vsub.f32 %v1333, %v1521
        %v1530 = vsub.f32 %v1334, %v1522
        %v1531 = vsub.f32 %v1335, %v1523
        %v1532 = vmul.f32 %v836, %v1000
        %v1533 = vmul.f32 %v837, %v1001
        %v1534 = vmul.f32 %v838, %v1002
        %v1535 = vmul.f32 %v839, %v1003
        %v1536 = vmul.f32 %v840, %v1004
        %v1537 = vmul.f32 %v841, %v1005
        %v1538 = vmul.f32 %v842, %v1006
        %v1539 = vmul.f32 %v843, %v1007
        %v1540 = vsub.f32 %v1492, %v1532
        %v1541 = vsub.f32 %v1493, %v1533
        %v1542 = vsub.f32 %v1494, %v1534
        %v1543 = vsub.f32 %v1495, %v1535
        %v1544 = vsub.f32 %v1496, %v1536
        %v1545 = vsub.f32 %v1497, %v1537
        %v1546 = vsub.f32 %v1498, %v1538
        %v1547 = vsub.f32 %v1499, %v1539
        %v1548 = vmul.f32 %v836, 2.0
        %v1549 = vmul.f32 %v837, 2.0
        %v1550 = vmul.f32 %v838, 2.0
        %v1551 = vmul.f32 %v839, 2.0
        %v1552 = vmul.f32 %v840, 2.0
        %v1553 = vmul.f32 %v841, 2.0
        %v1554 = vmul.f32 %v842, 2.0
        %v1555 = vmul.f32 %v843, 2.0
        %v1556 = vmul.f32 %v1548, %v1000
        %v1557 = vmul.f32 %v1549, %v1001
        %v1558 = vmul.f32 %v1550, %v1002
        %v1559 = vmul.f32 %v1551, %v1003
        %v1560 = vmul.f32 %v1552, %v1004
        %v1561 = vmul.f32 %v1553, %v1005
        %v1562 = vmul.f32 %v1554, %v1006
        %v1563 = vmul.f32 %v1555, %v1007
        %v1564 = vadd.f32 %v1556, 0.0001
        %v1565 = vadd.f32 %v1557, 0.0001
        %v1566 = vadd.f32 %v1558, 0.0001
        %v1567 = vadd.f32 %v1559, 0.0001
        %v1568 = vadd.f32 %v1560, 0.0001
        %v1569 = vadd.f32 %v1561, 0.0001
        %v1570 = vadd.f32 %v1562, 0.0001
        %v1571 = vadd.f32 %v1563, 0.0001
        %v1572 = vmul.f32 %v1540, 2.0
        %v1573 = vmul.f32 %v1541, 2.0
        %v1574 = vmul.f32 %v1542, 2.0
        %v1575 = vmul.f32 %v1543, 2.0
        %v1576 = vmul.f32 %v1544, 2.0
        %v1577 = vmul.f32 %v1545, 2.0
        %v1578 = vmul.f32 %v1546, 2.0
        %v1579 = vmul.f32 %v1547, 2.0
        %v1580 = vadd.f32 %v1572, 0.0009
        %v1581 = vadd.f32 %v1573, 0.0009
        %v1582 = vadd.f32 %v1574, 0.0009
        %v1583 = vadd.f32 %v1575, 0.0009
        %v1584 = vadd.f32 %v1576, 0.0009
        %v1585 = vadd.f32 %v1577, 0.0009
        %v1586 = vadd.f32 %v1578, 0.0009
        %v1587 = vadd.f32 %v1579, 0.0009
        %v1588 = vmul.f32 %v1564, %v1580
        %v1589 = vmul.f32 %v1565, %v1581
        %v1590 = vmul.f32 %v1566, %v1582
        %v1591 = vmul.f32 %v1567, %v1583
        %v1592 = vmul.f32 %v1568, %v1584
        %v1593 = vmul.f32 %v1569, %v1585
        %v1594 = vmul.f32 %v1570, %v1586
        %v1595 = vmul.f32 %v1571, %v1587
        %v1596 = vadd.f32 %v1500, %v1516
        %v1597 = vadd.f32 %v1501, %v1517
        %v1598 = vadd.f32 %v1502, %v1518
        %v1599 = vadd.f32 %v1503, %v1519
        %v1600 = vadd.f32 %v1504, %v1520
        %v1601 = vadd.f32 %v1505, %v1521
        %v1602 = vadd.f32 %v1506, %v1522
        %v1603 = vadd.f32 %v1507, %v1523
        %v1604 = vadd.f32 %v1596, 0.0001
        %v1605 = vadd.f32 %v1597, 0.0001
        %v1606 = vadd.f32 %v1598, 0.0001
        %v1607 = vadd.f32 %v1599, 0.0001
        %v1608 = vadd.f32 %v1600, 0.0001
        %v1609 = vadd.f32 %v1601, 0.0001
        %v1610 = vadd.f32 %v1602, 0.0001
        %v1611 = vadd.f32 %v1603, 0.0001
        %v1612 = vadd.f32 %v1508, %v1524
        %v1613 = vadd.f32 %v1509, %v1525
        %v1614 = vadd.f32 %v1510, %v1526
        %v1615 = vadd.f32 %v1511, %v1527
        %v1616 = vadd.f32 %v1512, %v1528
        %v1617 = vadd.f32 %v1513, %v1529
        %v1618 = vadd.f32 %v1514, %v1530
        %v1619 = vadd.f32 %v1515, %v1531
        %v1620 = vadd.f32 %v1612, 0.0009
        %v1621 = vadd.f32 %v1613, 0.0009
        %v1622 = vadd.f32 %v1614, 0.0009
        %v1623 = vadd.f32 %v1615, 0.0009
        %v1624 = vadd.f32 %v1616, 0.0009
        %v1625 = vadd.f32 %v1617, 0.0009
        %v1626 = vadd.f32 %v1618, 0.0009
        %v1627 = vadd.f32 %v1619, 0.0009
        %v1628 = vmul.f32 %v1604, %v1620
        %v1629 = vmul.f32 %v1605, %v1621
        %v1630 = vmul.f32 %v1606, %v1622
        %v1631 = vmul.f32 %v1607, %v1623
        %v1632 = vmul.f32 %v1608, %v1624
        %v1633 = vmul.f32 %v1609, %v1625
        %v1634 = vmul.f32 %v1610, %v1626
        %v1635 = vmul.f32 %v1611, %v1627
        %v1636 = vrcp.pop %v1628
        %v1637 = vrcp.pop %v1629
        %v1638 = vrcp.pop %v1630
        %v1639 = vrcp.pop %v1631
        %v1640 = vrcp.pop %v1632
        %v1641 = vrcp.pop %v1633
        %v1642 = vrcp.pop %v1634
        %v1643 = vrcp.pop %v1635
        %v1644 = vmul.f32 %v1588, %v1636
        %v1645 = vmul.f32 %v1589, %v1637
        %v1646 = vmul.f32 %v1590, %v1638
        %v1647 = vmul.f32 %v1591, %v1639
        %v1648 = vmul.f32 %v1592, %v1640
        %v1649 = vmul.f32 %v1593, %v1641
        %v1650 = vmul.f32 %v1594, %v1642
        %v1651 = vmul.f32 %v1595, %v1643
        %v1652 = vsub.f32 1.0, %v1644
        %v1653 = vsub.f32 1.0, %v1645
        %v1654 = vsub.f32 1.0, %v1646
        %v1655 = vsub.f32 1.0, %v1647
        %v1656 = vsub.f32 1.0, %v1648
        %v1657 = vsub.f32 1.0, %v1649
        %v1658 = vsub.f32 1.0, %v1650
        %v1659 = vsub.f32 1.0, %v1651
        %v1660 = vmul.f32 %v1652, 0.5
        %v1661 = vmul.f32 %v1653, 0.5
        %v1662 = vmul.f32 %v1654, 0.5
        %v1663 = vmul.f32 %v1655, 0.5
        %v1664 = vmul.f32 %v1656, 0.5
        %v1665 = vmul.f32 %v1657, 0.5
        %v1666 = vmul.f32 %v1658, 0.5
        %v1667 = vmul.f32 %v1659, 0.5
        %v1668 = vmax.f32 %v1660, 0.0
        %v1669 = vmax.f32 %v1661, 0.0
        %v1670 = vmax.f32 %v1662, 0.0
        %v1671 = vmax.f32 %v1663, 0.0
        %v1672 = vmax.f32 %v1664, 0.0
        %v1673 = vmax.f32 %v1665, 0.0
        %v1674 = vmax.f32 %v1666, 0.0
        %v1675 = vmax.f32 %v1667, 0.0
        %v1676 = vmin.f32 %v1668, 1.0
        %v1677 = vmin.f32 %v1669, 1.0
        %v1678 = vmin.f32 %v1670, 1.0
        %v1679 = vmin.f32 %v1671, 1.0
        %v1680 = vmin.f32 %v1672, 1.0
        %v1681 = vmin.f32 %v1673, 1.0
        %v1682 = vmin.f32 %v1674, 1.0
        %v1683 = vmin.f32 %v1675, 1.0
        %vm1684 = vcmask 130048
        %1685 = vst.msk [vmem:[%s207] sm:$0xff] %vm1684, %v1676
        %1686 = vst.msk [vmem:[%s207 + $0x8] sm:$0xff] %vm1684, %v1677
        %1687 = vst.msk [vmem:[%s207 + $0x10] sm:$0xff] %vm1684, %v1678
        %1688 = vst.msk [vmem:[%s207 + $0x18] sm:$0xff] %vm1684, %v1679
        %1689 = vst.msk [vmem:[%s207 + $0x20] sm:$0xff] %vm1684, %v1680
        %1690 = vst.msk [vmem:[%s207 + $0x28] sm:$0xff] %vm1684, %v1681
        %1691 = vst.msk [vmem:[%s207 + $0x30] sm:$0xff] %vm1684, %v1682
        %1692 = vst.msk [vmem:[%s207 + $0x38] sm:$0xff] %vm1684, %v1683
        %s1693 = sand.u32 %s82, 1
        %s1694 = scalar_lea.sflag [#allocation6], %s1693
        %s1695 = sand.u32 %s82, 1
        %s1696 = smul.addr %s1695, 64
        %s1697 = scalar_lea.vmem [#allocation9], %s1696
        // Predicated region
        $region37: #{tpu_custom_call.1} parent=27 // pred_check
          %p1698 = pneg %p92
        $region38: #{tpu_custom_call.1} parent=27 // pred_check_branch
          %1700 = sbr.rel (%p1698) target = $region40
        $region39: #{tpu_custom_call.1} parent=27 // pred_region
          %s1701 = smul.u32 4, %s22
          %1703 = vsyncadd %s1694, 0
          %s1704 = smul.addr %s1701, 2
          %s1705 = smul.addr %s1704, 8
          %s1706 = scalar_lea.hbm %s2, %s1705
          %s1707 = sshll.u32 %s1697, 4
          %s1708 = int_to_ptr.vmem [resolvable:$true] %s1707
          %s1709 = sshll.u32 %s1706, 4
          %s1710 = int_to_ptr.hbm [resolvable:$true] %s1709
          %1715 = dma.vmem_to_hbm [thread:$0]  %s1708, 1024, %s1710, %s1694, 128, 128, 8
        $region40: #{tpu_custom_call.1} parent=27 // pred_fallthru
          _
      $region28: #{tpu_custom_call.1} parent=5 // pred_fallthru
        _
      %p1716 = scmp.le.s32.totalorder 2, %s17
      // Predicated region
      $region41: #{tpu_custom_call.1} parent=5 // pred_check
        %p1717 = pneg %p1716
      $region42: #{tpu_custom_call.1} parent=5 // pred_check_branch
        %1719 = sbr.rel (%p1717) target = $region44
      $region43: #{tpu_custom_call.1} parent=5 // pred_region
        %s1720 = ssub.s32 %s17, 2
        // Predicated region
        $region45: #{tpu_custom_call.1} parent=43 // pred_check
          %p1721 = pneg %p98
        $region46: #{tpu_custom_call.1} parent=43 // pred_check_branch
          %1723 = sbr.rel (%p1721) target = $region48
        $region47: #{tpu_custom_call.1} parent=43 // pred_region
          %s1724 = sand.u32 %s83, 1
          %s1725 = scalar_lea.sflag [#allocation6], %s1724
          %s1726 = sand.u32 %s83, 1
          %s1727 = smul.addr %s1726, 64
          %s1728 = scalar_lea.vmem [#allocation9], %s1727
          %1730 = dma.done %s1725, 1024
        $region48: #{tpu_custom_call.1} parent=43 // pred_fallthru
          _
      $region44: #{tpu_custom_call.1} parent=5 // pred_fallthru
        _
    $region6: #{tpu_custom_call.1} parent=1 // loop_footer
      %s21 = sadd.s32 1, %s17
    $region7: #{tpu_custom_call.1} parent=1 // loop_footer_branch
      %16 = sbr.rel target = $region3
    $region8: #{tpu_custom_call.1} parent=1 // loop_exit
      _
    %1731 = vsyncpa [#allocation5], 1
    %s1732 = scalar_lea.sflag [#allocation5], 1
    %1733 = vsyncpa %s1732, 1
    %1734 = vsyncpa [#allocation8], 1
    %s1735 = scalar_lea.sflag [#allocation8], 1
    %1736 = vsyncpa %s1735, 1
    %1737 = vsyncpa [#allocation6], 1
    %s1738 = scalar_lea.sflag [#allocation6], 1
    %1739 = vsyncpa %s1738, 1

</llo_original>
